<compile_context>
chip_gen: v7x
topology: tpu7x:2x2x1
jax: 0.10.0
libtpu: 0.0.40
codegen_flags: <defaults>
</compile_context>

<pallas_src>
import functools

import numpy as np
import jax
import jax.numpy as jnp
from jax.experimental import pallas as pl
from jax.experimental.pallas import tpu as pltpu


def _cdiv(a: int, b: int) -> int:
    return -(-a // b)


def _gauss_taps(size: int, sigma: float) -> np.ndarray:
    """1D Gaussian window, shape (size,), normalized to sum to 1 (numpy f32)."""
    coords = np.arange(size, dtype=np.float64) - (size // 2)
    g = np.exp(-(coords ** 2) / (2.0 * sigma ** 2))
    return (g / g.sum()).astype(np.float32)


def _vmem_capacity_bytes() -> int:
    try:
        info = pltpu.get_tpu_info()
        return int(getattr(info, "vmem_capacity_bytes", 64 * 1024 * 1024))
    except Exception:
        return 64 * 1024 * 1024  # conservative (v7x) fallback


def _make_ssim_kernel(c1: float, c2: float, taps, ho: int, wo: int):
    """Pallas kernel body with all compile-time constants closed over."""
    taps = [float(t) for t in taps]          # baked-in scalar constants
    ws = len(taps)
    inv_area = 1.0 / float(ho * wo)

    def gfilt(img):
        # img: (n_blk, H, W) f32.  Separable "valid" Gaussian blur, H pass then
        # W pass (same order as the PyTorch _gaussian_filter), as an 11-tap
        # shift-and-add on the VPU.  Static slices, vectorized over the block.
        acc_h = taps[0] * img[:, 0:ho, :]
        for t in range(1, ws):
            acc_h = acc_h + taps[t] * img[:, t:t + ho, :]       # (n_blk, Ho, W)
        acc = taps[0] * acc_h[:, :, 0:wo]
        for t in range(1, ws):
            acc = acc + taps[t] * acc_h[:, :, t:t + wo]          # (n_blk, Ho, Wo)
        return acc

    def kernel(x_ref, y_ref, out_ref):
        # x_ref, y_ref: VMEM [n_blk, H, W] in the input dtype
        # out_ref:      VMEM f32[n_blk, 1, 1] per-(b,c) SSIM for this block
        x = x_ref[...].astype(jnp.float32)
        y = y_ref[...].astype(jnp.float32)

        mu1 = gfilt(x)
        mu2 = gfilt(y)
        sigma1_sq = gfilt(x * x) - mu1 * mu1
        sigma2_sq = gfilt(y * y) - mu2 * mu2
        sigma12 = gfilt(x * y) - mu1 * mu2

        cs_map = (2.0 * sigma12 + c2) / (sigma1_sq + sigma2_sq + c2)
        ssim_map = ((2.0 * mu1 * mu2 + c1) /
                    (mu1 * mu1 + mu2 * mu2 + c1)) * cs_map       # (n_blk, Ho, Wo)

        row = jnp.sum(ssim_map, axis=-1, keepdims=True)          # (n_blk, Ho, 1)
        tot = jnp.sum(row, axis=-2, keepdims=True)               # (n_blk, 1, 1)
        out_ref[...] = tot * inv_area

    return kernel


@functools.partial(
    jax.jit,
    static_argnames=("data_range", "window_size", "window_sigma", "k",
                     "size_average", "non_negative_ssim"),
)
def ssim_pallas(image1, image2, *, data_range: float = 255.0,
                window_size: int = 11, window_sigma: float = 1.5,
                k=(0.01, 0.03), size_average: bool = True,
                non_negative_ssim: bool = False):
    """SSIM.forward equivalent. Inputs are NCHW arrays of equal shape."""
    assert image1.shape == image2.shape
    assert image1.ndim == 4
    B, C, H, W = image1.shape
    assert window_size % 2 == 1
    assert H >= window_size and W >= window_size

    k1, k2 = k
    c1 = float((k1 * data_range) ** 2)
    c2 = float((k2 * data_range) ** 2)
    ws = int(window_size)
    Ho, Wo = H - ws + 1, W - ws + 1
    taps = _gauss_taps(ws, float(window_sigma))

    N = B * C
    x = image1.reshape(N, H, W)          # native dtype; cast happens in-kernel
    y = image2.reshape(N, H, W)
    itemsize = jnp.dtype(image1.dtype).itemsize

    # ---- block sizing over N from real VMEM capacity --------------------
    cap = _vmem_capacity_bytes()
    # per-image live set: f32 temporaries (x, y, one product map, one H-pass
    # temp + generous slack for the blur partials; mu/sigma/cs/ssim maps) plus
    # the double-buffered native-dtype input DMA blocks (2 inputs x 2 buffers).
    per_img_bytes = (4 * H * W + 2 * Ho * W + 8 * Ho * Wo) * 4 \
                    + 4 * H * W * itemsize
    budget = int(0.55 * cap)
    n_fit = max(1, budget // per_img_bytes)
    # keep >= min(N, 4) grid steps so both TensorCores on v7x get >=2 steps.
    min_steps = min(N, 4)
    n_blk = int(max(1, min(n_fit, N, _cdiv(N, min_steps))))
    G = _cdiv(N, n_blk)
    N_pad = G * n_blk
    if N_pad > N:
        pad = ((0, N_pad - N), (0, 0), (0, 0))
        x = jnp.pad(x, pad)              # zero images -> SSIM 1.0, sliced away
        y = jnp.pad(y, pad)

    # vmem limit tied to the computed requirement (2x margin), capped below
    # the physical capacity of the current generation.
    need = n_blk * per_img_bytes + (1 << 20)
    vmem_limit = int(min(0.92 * cap, max(2 * need, 32 * 1024 * 1024)))

    kernel = _make_ssim_kernel(c1, c2, taps, Ho, Wo)

    out = pl.pallas_call(
        kernel,
        out_shape=jax.ShapeDtypeStruct((N_pad, 1, 1), jnp.float32),
        grid=(G,),
        in_specs=[
            pl.BlockSpec((n_blk, H, W), lambda i: (i, 0, 0)),   # image1 block
            pl.BlockSpec((n_blk, H, W), lambda i: (i, 0, 0)),   # image2 block
        ],
        out_specs=pl.BlockSpec((n_blk, 1, 1), lambda i: (i, 0, 0)),
        compiler_params=pltpu.CompilerParams(
            dimension_semantics=("parallel",),
            vmem_limit_bytes=vmem_limit,
        ),
    )(x, y)

    ssim_per_channel = out.reshape(N_pad)[:N].reshape(B, C)
    if non_negative_ssim:
        ssim_per_channel = jnp.maximum(ssim_per_channel, 0.0)
    return ssim_per_channel.mean() if size_average else ssim_per_channel.mean(axis=1)


def _ssim_reference_per_channel(image1, image2, *, data_range=255.0,
                                window_size=11, window_sigma=1.5,
                                k=(0.01, 0.03)):
    """Plain-JAX reference mirroring the PyTorch shift-add conv semantics."""
    B, C, H, W = image1.shape
    g = jnp.asarray(_gauss_taps(window_size, window_sigma))
    Ho, Wo = H - window_size + 1, W - window_size + 1

    def gfilt(img):  # img: (B, C, H, W)
        acc_h = sum(g[t] * img[:, :, t:t + Ho, :] for t in range(window_size))
        return sum(g[t] * acc_h[:, :, :, t:t + Wo] for t in range(window_size))

    x = image1.astype(jnp.float32)
    y = image2.astype(jnp.float32)
    k1, k2 = k
    c1 = (k1 * data_range) ** 2
    c2 = (k2 * data_range) ** 2
    mu1, mu2 = gfilt(x), gfilt(y)
    s1 = gfilt(x * x) - mu1 * mu1
    s2 = gfilt(y * y) - mu2 * mu2
    s12 = gfilt(x * y) - mu1 * mu2
    cs = (2 * s12 + c2) / (s1 + s2 + c2)
    ssim_map = (2 * mu1 * mu2 + c1) / (mu1 * mu1 + mu2 * mu2 + c1) * cs
    return ssim_map.reshape(B, C, -1).mean(-1)


if __name__ == "__main__":
    key = jax.random.PRNGKey(0)
    kk1, kk2 = jax.random.split(key)
    # N = B*C = 12 -> n_blk = 3 images/step, grid of 4 "parallel" steps.
    B, C, H, W = 4, 3, 16, 16
    img1 = jax.random.uniform(kk1, (B, C, H, W), dtype=jnp.float32) * 255.0
    noise = jax.random.normal(kk2, (B, C, H, W), dtype=jnp.float32) * 16.0
    img2 = jnp.clip(img1 + noise, 0.0, 255.0)

    out_mean = jax.block_until_ready(
        ssim_pallas(img1, img2, data_range=255.0, size_average=True))
    out_batch = jax.block_until_ready(
        ssim_pallas(img1, img2, data_range=255.0, size_average=False))

    ref_pc = _ssim_reference_per_channel(img1, img2, data_range=255.0)
    assert jnp.allclose(out_mean, ref_pc.mean(), rtol=1e-4, atol=1e-4), \
        (out_mean, ref_pc.mean())
    assert jnp.allclose(out_batch, ref_pc.mean(axis=1), rtol=1e-4, atol=1e-4), \
        (out_batch, ref_pc.mean(axis=1))
    print("KERNEL_OK")
</pallas_src>

<mosaic_0001>
module attributes {stable_mosaic.version = 11 : i64} {
  func.func @kernel(%arg0: i32, %arg1: memref<3x16x16xf32, #tpu.memory_space<vmem>>, %arg2: memref<3x16x16xf32, #tpu.memory_space<vmem>>, %arg3: memref<3x1x1xf32, #tpu.memory_space<vmem>>) attributes {dimension_semantics = [#tpu.dimension_semantics<parallel>], iteration_bounds = array<i64: 4>, scalar_prefetch = 0 : i64, scratch_operands = 0 : i64, tpu.core_type = #tpu.core_type<tc>, window_params = [{transform_indices = @transform_0, window_bounds = array<i64: 3, 16, 16>}, {transform_indices = @transform_1, window_bounds = array<i64: 3, 16, 16>}, {transform_indices = @transform_2, window_bounds = array<i64: 3, 1, 1>}]} {
    %c0 = arith.constant 0 : index
    %c0_0 = arith.constant 0 : index
    %c0_1 = arith.constant 0 : index
    %0 = vector.load %arg1[%c0, %c0_0, %c0_1] : memref<3x16x16xf32, #tpu.memory_space<vmem>>, vector<3x16x16xf32>
    %c0_2 = arith.constant 0 : index
    %c0_3 = arith.constant 0 : index
    %c0_4 = arith.constant 0 : index
    %1 = vector.load %arg2[%c0_2, %c0_3, %c0_4] : memref<3x16x16xf32, #tpu.memory_space<vmem>>, vector<3x16x16xf32>
    %2 = vector.extract_strided_slice %0 {offsets = [0, 0, 0], sizes = [3, 6, 16], strides = [1, 1, 1]} : vector<3x16x16xf32> to vector<3x6x16xf32>
    %cst = arith.constant 0.00102838012 : f32
    %3 = vector.broadcast %cst : f32 to vector<3x6x16xf32>
    %4 = arith.mulf %3, %2 : vector<3x6x16xf32>
    %5 = vector.extract_strided_slice %0 {offsets = [0, 1, 0], sizes = [3, 6, 16], strides = [1, 1, 1]} : vector<3x16x16xf32> to vector<3x6x16xf32>
    %cst_5 = arith.constant 0.00759875821 : f32
    %6 = vector.broadcast %cst_5 : f32 to vector<3x6x16xf32>
    %7 = arith.mulf %6, %5 : vector<3x6x16xf32>
    %8 = arith.addf %4, %7 : vector<3x6x16xf32>
    %9 = vector.extract_strided_slice %0 {offsets = [0, 2, 0], sizes = [3, 6, 16], strides = [1, 1, 1]} : vector<3x16x16xf32> to vector<3x6x16xf32>
    %cst_6 = arith.constant 0.0360007733 : f32
    %10 = vector.broadcast %cst_6 : f32 to vector<3x6x16xf32>
    %11 = arith.mulf %10, %9 : vector<3x6x16xf32>
    %12 = arith.addf %8, %11 : vector<3x6x16xf32>
    %13 = vector.extract_strided_slice %0 {offsets = [0, 3, 0], sizes = [3, 6, 16], strides = [1, 1, 1]} : vector<3x16x16xf32> to vector<3x6x16xf32>
    %cst_7 = arith.constant 0.109360687 : f32
    %14 = vector.broadcast %cst_7 : f32 to vector<3x6x16xf32>
    %15 = arith.mulf %14, %13 : vector<3x6x16xf32>
    %16 = arith.addf %12, %15 : vector<3x6x16xf32>
    %17 = vector.extract_strided_slice %0 {offsets = [0, 4, 0], sizes = [3, 6, 16], strides = [1, 1, 1]} : vector<3x16x16xf32> to vector<3x6x16xf32>
    %cst_8 = arith.constant 0.213005543 : f32
    %18 = vector.broadcast %cst_8 : f32 to vector<3x6x16xf32>
    %19 = arith.mulf %18, %17 : vector<3x6x16xf32>
    %20 = arith.addf %16, %19 : vector<3x6x16xf32>
    %21 = vector.extract_strided_slice %0 {offsets = [0, 5, 0], sizes = [3, 6, 16], strides = [1, 1, 1]} : vector<3x16x16xf32> to vector<3x6x16xf32>
    %cst_9 = arith.constant 0.266011715 : f32
    %22 = vector.broadcast %cst_9 : f32 to vector<3x6x16xf32>
    %23 = arith.mulf %22, %21 : vector<3x6x16xf32>
    %24 = arith.addf %20, %23 : vector<3x6x16xf32>
    %25 = vector.extract_strided_slice %0 {offsets = [0, 6, 0], sizes = [3, 6, 16], strides = [1, 1, 1]} : vector<3x16x16xf32> to vector<3x6x16xf32>
    %cst_10 = arith.constant 0.213005543 : f32
    %26 = vector.broadcast %cst_10 : f32 to vector<3x6x16xf32>
    %27 = arith.mulf %26, %25 : vector<3x6x16xf32>
    %28 = arith.addf %24, %27 : vector<3x6x16xf32>
    %29 = vector.extract_strided_slice %0 {offsets = [0, 7, 0], sizes = [3, 6, 16], strides = [1, 1, 1]} : vector<3x16x16xf32> to vector<3x6x16xf32>
    %cst_11 = arith.constant 0.109360687 : f32
    %30 = vector.broadcast %cst_11 : f32 to vector<3x6x16xf32>
    %31 = arith.mulf %30, %29 : vector<3x6x16xf32>
    %32 = arith.addf %28, %31 : vector<3x6x16xf32>
    %33 = vector.extract_strided_slice %0 {offsets = [0, 8, 0], sizes = [3, 6, 16], strides = [1, 1, 1]} : vector<3x16x16xf32> to vector<3x6x16xf32>
    %cst_12 = arith.constant 0.0360007733 : f32
    %34 = vector.broadcast %cst_12 : f32 to vector<3x6x16xf32>
    %35 = arith.mulf %34, %33 : vector<3x6x16xf32>
    %36 = arith.addf %32, %35 : vector<3x6x16xf32>
    %37 = vector.extract_strided_slice %0 {offsets = [0, 9, 0], sizes = [3, 6, 16], strides = [1, 1, 1]} : vector<3x16x16xf32> to vector<3x6x16xf32>
    %cst_13 = arith.constant 0.00759875821 : f32
    %38 = vector.broadcast %cst_13 : f32 to vector<3x6x16xf32>
    %39 = arith.mulf %38, %37 : vector<3x6x16xf32>
    %40 = arith.addf %36, %39 : vector<3x6x16xf32>
    %41 = vector.extract_strided_slice %0 {offsets = [0, 10, 0], sizes = [3, 6, 16], strides = [1, 1, 1]} : vector<3x16x16xf32> to vector<3x6x16xf32>
    %cst_14 = arith.constant 0.00102838012 : f32
    %42 = vector.broadcast %cst_14 : f32 to vector<3x6x16xf32>
    %43 = arith.mulf %42, %41 : vector<3x6x16xf32>
    %44 = arith.addf %40, %43 : vector<3x6x16xf32>
    %45 = vector.extract_strided_slice %44 {offsets = [0, 0, 0], sizes = [3, 6, 6], strides = [1, 1, 1]} : vector<3x6x16xf32> to vector<3x6x6xf32>
    %cst_15 = arith.constant 0.00102838012 : f32
    %46 = vector.broadcast %cst_15 : f32 to vector<3x6x6xf32>
    %47 = arith.mulf %46, %45 : vector<3x6x6xf32>
    %48 = vector.extract_strided_slice %44 {offsets = [0, 0, 1], sizes = [3, 6, 6], strides = [1, 1, 1]} : vector<3x6x16xf32> to vector<3x6x6xf32>
    %cst_16 = arith.constant 0.00759875821 : f32
    %49 = vector.broadcast %cst_16 : f32 to vector<3x6x6xf32>
    %50 = arith.mulf %49, %48 : vector<3x6x6xf32>
    %51 = arith.addf %47, %50 : vector<3x6x6xf32>
    %52 = vector.extract_strided_slice %44 {offsets = [0, 0, 2], sizes = [3, 6, 6], strides = [1, 1, 1]} : vector<3x6x16xf32> to vector<3x6x6xf32>
    %cst_17 = arith.constant 0.0360007733 : f32
    %53 = vector.broadcast %cst_17 : f32 to vector<3x6x6xf32>
    %54 = arith.mulf %53, %52 : vector<3x6x6xf32>
    %55 = arith.addf %51, %54 : vector<3x6x6xf32>
    %56 = vector.extract_strided_slice %44 {offsets = [0, 0, 3], sizes = [3, 6, 6], strides = [1, 1, 1]} : vector<3x6x16xf32> to vector<3x6x6xf32>
    %cst_18 = arith.constant 0.109360687 : f32
    %57 = vector.broadcast %cst_18 : f32 to vector<3x6x6xf32>
    %58 = arith.mulf %57, %56 : vector<3x6x6xf32>
    %59 = arith.addf %55, %58 : vector<3x6x6xf32>
    %60 = vector.extract_strided_slice %44 {offsets = [0, 0, 4], sizes = [3, 6, 6], strides = [1, 1, 1]} : vector<3x6x16xf32> to vector<3x6x6xf32>
    %cst_19 = arith.constant 0.213005543 : f32
    %61 = vector.broadcast %cst_19 : f32 to vector<3x6x6xf32>
    %62 = arith.mulf %61, %60 : vector<3x6x6xf32>
    %63 = arith.addf %59, %62 : vector<3x6x6xf32>
    %64 = vector.extract_strided_slice %44 {offsets = [0, 0, 5], sizes = [3, 6, 6], strides = [1, 1, 1]} : vector<3x6x16xf32> to vector<3x6x6xf32>
    %cst_20 = arith.constant 0.266011715 : f32
    %65 = vector.broadcast %cst_20 : f32 to vector<3x6x6xf32>
    %66 = arith.mulf %65, %64 : vector<3x6x6xf32>
    %67 = arith.addf %63, %66 : vector<3x6x6xf32>
    %68 = vector.extract_strided_slice %44 {offsets = [0, 0, 6], sizes = [3, 6, 6], strides = [1, 1, 1]} : vector<3x6x16xf32> to vector<3x6x6xf32>
    %cst_21 = arith.constant 0.213005543 : f32
    %69 = vector.broadcast %cst_21 : f32 to vector<3x6x6xf32>
    %70 = arith.mulf %69, %68 : vector<3x6x6xf32>
    %71 = arith.addf %67, %70 : vector<3x6x6xf32>
    %72 = vector.extract_strided_slice %44 {offsets = [0, 0, 7], sizes = [3, 6, 6], strides = [1, 1, 1]} : vector<3x6x16xf32> to vector<3x6x6xf32>
    %cst_22 = arith.constant 0.109360687 : f32
    %73 = vector.broadcast %cst_22 : f32 to vector<3x6x6xf32>
    %74 = arith.mulf %73, %72 : vector<3x6x6xf32>
    %75 = arith.addf %71, %74 : vector<3x6x6xf32>
    %76 = vector.extract_strided_slice %44 {offsets = [0, 0, 8], sizes = [3, 6, 6], strides = [1, 1, 1]} : vector<3x6x16xf32> to vector<3x6x6xf32>
    %cst_23 = arith.constant 0.0360007733 : f32
    %77 = vector.broadcast %cst_23 : f32 to vector<3x6x6xf32>
    %78 = arith.mulf %77, %76 : vector<3x6x6xf32>
    %79 = arith.addf %75, %78 : vector<3x6x6xf32>
    %80 = vector.extract_strided_slice %44 {offsets = [0, 0, 9], sizes = [3, 6, 6], strides = [1, 1, 1]} : vector<3x6x16xf32> to vector<3x6x6xf32>
    %cst_24 = arith.constant 0.00759875821 : f32
    %81 = vector.broadcast %cst_24 : f32 to vector<3x6x6xf32>
    %82 = arith.mulf %81, %80 : vector<3x6x6xf32>
    %83 = arith.addf %79, %82 : vector<3x6x6xf32>
    %84 = vector.extract_strided_slice %44 {offsets = [0, 0, 10], sizes = [3, 6, 6], strides = [1, 1, 1]} : vector<3x6x16xf32> to vector<3x6x6xf32>
    %cst_25 = arith.constant 0.00102838012 : f32
    %85 = vector.broadcast %cst_25 : f32 to vector<3x6x6xf32>
    %86 = arith.mulf %85, %84 : vector<3x6x6xf32>
    %87 = arith.addf %83, %86 : vector<3x6x6xf32>
    %88 = vector.extract_strided_slice %1 {offsets = [0, 0, 0], sizes = [3, 6, 16], strides = [1, 1, 1]} : vector<3x16x16xf32> to vector<3x6x16xf32>
    %cst_26 = arith.constant 0.00102838012 : f32
    %89 = vector.broadcast %cst_26 : f32 to vector<3x6x16xf32>
    %90 = arith.mulf %89, %88 : vector<3x6x16xf32>
    %91 = vector.extract_strided_slice %1 {offsets = [0, 1, 0], sizes = [3, 6, 16], strides = [1, 1, 1]} : vector<3x16x16xf32> to vector<3x6x16xf32>
    %cst_27 = arith.constant 0.00759875821 : f32
    %92 = vector.broadcast %cst_27 : f32 to vector<3x6x16xf32>
    %93 = arith.mulf %92, %91 : vector<3x6x16xf32>
    %94 = arith.addf %90, %93 : vector<3x6x16xf32>
    %95 = vector.extract_strided_slice %1 {offsets = [0, 2, 0], sizes = [3, 6, 16], strides = [1, 1, 1]} : vector<3x16x16xf32> to vector<3x6x16xf32>
    %cst_28 = arith.constant 0.0360007733 : f32
    %96 = vector.broadcast %cst_28 : f32 to vector<3x6x16xf32>
    %97 = arith.mulf %96, %95 : vector<3x6x16xf32>
    %98 = arith.addf %94, %97 : vector<3x6x16xf32>
    %99 = vector.extract_strided_slice %1 {offsets = [0, 3, 0], sizes = [3, 6, 16], strides = [1, 1, 1]} : vector<3x16x16xf32> to vector<3x6x16xf32>
    %cst_29 = arith.constant 0.109360687 : f32
    %100 = vector.broadcast %cst_29 : f32 to vector<3x6x16xf32>
    %101 = arith.mulf %100, %99 : vector<3x6x16xf32>
    %102 = arith.addf %98, %101 : vector<3x6x16xf32>
    %103 = vector.extract_strided_slice %1 {offsets = [0, 4, 0], sizes = [3, 6, 16], strides = [1, 1, 1]} : vector<3x16x16xf32> to vector<3x6x16xf32>
    %cst_30 = arith.constant 0.213005543 : f32
    %104 = vector.broadcast %cst_30 : f32 to vector<3x6x16xf32>
    %105 = arith.mulf %104, %103 : vector<3x6x16xf32>
    %106 = arith.addf %102, %105 : vector<3x6x16xf32>
    %107 = vector.extract_strided_slice %1 {offsets = [0, 5, 0], sizes = [3, 6, 16], strides = [1, 1, 1]} : vector<3x16x16xf32> to vector<3x6x16xf32>
    %cst_31 = arith.constant 0.266011715 : f32
    %108 = vector.broadcast %cst_31 : f32 to vector<3x6x16xf32>
    %109 = arith.mulf %108, %107 : vector<3x6x16xf32>
    %110 = arith.addf %106, %109 : vector<3x6x16xf32>
    %111 = vector.extract_strided_slice %1 {offsets = [0, 6, 0], sizes = [3, 6, 16], strides = [1, 1, 1]} : vector<3x16x16xf32> to vector<3x6x16xf32>
    %cst_32 = arith.constant 0.213005543 : f32
    %112 = vector.broadcast %cst_32 : f32 to vector<3x6x16xf32>
    %113 = arith.mulf %112, %111 : vector<3x6x16xf32>
    %114 = arith.addf %110, %113 : vector<3x6x16xf32>
    %115 = vector.extract_strided_slice %1 {offsets = [0, 7, 0], sizes = [3, 6, 16], strides = [1, 1, 1]} : vector<3x16x16xf32> to vector<3x6x16xf32>
    %cst_33 = arith.constant 0.109360687 : f32
    %116 = vector.broadcast %cst_33 : f32 to vector<3x6x16xf32>
    %117 = arith.mulf %116, %115 : vector<3x6x16xf32>
    %118 = arith.addf %114, %117 : vector<3x6x16xf32>
    %119 = vector.extract_strided_slice %1 {offsets = [0, 8, 0], sizes = [3, 6, 16], strides = [1, 1, 1]} : vector<3x16x16xf32> to vector<3x6x16xf32>
    %cst_34 = arith.constant 0.0360007733 : f32
    %120 = vector.broadcast %cst_34 : f32 to vector<3x6x16xf32>
    %121 = arith.mulf %120, %119 : vector<3x6x16xf32>
    %122 = arith.addf %118, %121 : vector<3x6x16xf32>
    %123 = vector.extract_strided_slice %1 {offsets = [0, 9, 0], sizes = [3, 6, 16], strides = [1, 1, 1]} : vector<3x16x16xf32> to vector<3x6x16xf32>
    %cst_35 = arith.constant 0.00759875821 : f32
    %124 = vector.broadcast %cst_35 : f32 to vector<3x6x16xf32>
    %125 = arith.mulf %124, %123 : vector<3x6x16xf32>
    %126 = arith.addf %122, %125 : vector<3x6x16xf32>
    %127 = vector.extract_strided_slice %1 {offsets = [0, 10, 0], sizes = [3, 6, 16], strides = [1, 1, 1]} : vector<3x16x16xf32> to vector<3x6x16xf32>
    %cst_36 = arith.constant 0.00102838012 : f32
    %128 = vector.broadcast %cst_36 : f32 to vector<3x6x16xf32>
    %129 = arith.mulf %128, %127 : vector<3x6x16xf32>
    %130 = arith.addf %126, %129 : vector<3x6x16xf32>
    %131 = vector.extract_strided_slice %130 {offsets = [0, 0, 0], sizes = [3, 6, 6], strides = [1, 1, 1]} : vector<3x6x16xf32> to vector<3x6x6xf32>
    %cst_37 = arith.constant 0.00102838012 : f32
    %132 = vector.broadcast %cst_37 : f32 to vector<3x6x6xf32>
    %133 = arith.mulf %132, %131 : vector<3x6x6xf32>
    %134 = vector.extract_strided_slice %130 {offsets = [0, 0, 1], sizes = [3, 6, 6], strides = [1, 1, 1]} : vector<3x6x16xf32> to vector<3x6x6xf32>
    %cst_38 = arith.constant 0.00759875821 : f32
    %135 = vector.broadcast %cst_38 : f32 to vector<3x6x6xf32>
    %136 = arith.mulf %135, %134 : vector<3x6x6xf32>
    %137 = arith.addf %133, %136 : vector<3x6x6xf32>
    %138 = vector.extract_strided_slice %130 {offsets = [0, 0, 2], sizes = [3, 6, 6], strides = [1, 1, 1]} : vector<3x6x16xf32> to vector<3x6x6xf32>
    %cst_39 = arith.constant 0.0360007733 : f32
    %139 = vector.broadcast %cst_39 : f32 to vector<3x6x6xf32>
    %140 = arith.mulf %139, %138 : vector<3x6x6xf32>
    %141 = arith.addf %137, %140 : vector<3x6x6xf32>
    %142 = vector.extract_strided_slice %130 {offsets = [0, 0, 3], sizes = [3, 6, 6], strides = [1, 1, 1]} : vector<3x6x16xf32> to vector<3x6x6xf32>
    %cst_40 = arith.constant 0.109360687 : f32
    %143 = vector.broadcast %cst_40 : f32 to vector<3x6x6xf32>
    %144 = arith.mulf %143, %142 : vector<3x6x6xf32>
    %145 = arith.addf %141, %144 : vector<3x6x6xf32>
    %146 = vector.extract_strided_slice %130 {offsets = [0, 0, 4], sizes = [3, 6, 6], strides = [1, 1, 1]} : vector<3x6x16xf32> to vector<3x6x6xf32>
    %cst_41 = arith.constant 0.213005543 : f32
    %147 = vector.broadcast %cst_41 : f32 to vector<3x6x6xf32>
    %148 = arith.mulf %147, %146 : vector<3x6x6xf32>
    %149 = arith.addf %145, %148 : vector<3x6x6xf32>
    %150 = vector.extract_strided_slice %130 {offsets = [0, 0, 5], sizes = [3, 6, 6], strides = [1, 1, 1]} : vector<3x6x16xf32> to vector<3x6x6xf32>
    %cst_42 = arith.constant 0.266011715 : f32
    %151 = vector.broadcast %cst_42 : f32 to vector<3x6x6xf32>
    %152 = arith.mulf %151, %150 : vector<3x6x6xf32>
    %153 = arith.addf %149, %152 : vector<3x6x6xf32>
    %154 = vector.extract_strided_slice %130 {offsets = [0, 0, 6], sizes = [3, 6, 6], strides = [1, 1, 1]} : vector<3x6x16xf32> to vector<3x6x6xf32>
    %cst_43 = arith.constant 0.213005543 : f32
    %155 = vector.broadcast %cst_43 : f32 to vector<3x6x6xf32>
    %156 = arith.mulf %155, %154 : vector<3x6x6xf32>
    %157 = arith.addf %153, %156 : vector<3x6x6xf32>
    %158 = vector.extract_strided_slice %130 {offsets = [0, 0, 7], sizes = [3, 6, 6], strides = [1, 1, 1]} : vector<3x6x16xf32> to vector<3x6x6xf32>
    %cst_44 = arith.constant 0.109360687 : f32
    %159 = vector.broadcast %cst_44 : f32 to vector<3x6x6xf32>
    %160 = arith.mulf %159, %158 : vector<3x6x6xf32>
    %161 = arith.addf %157, %160 : vector<3x6x6xf32>
    %162 = vector.extract_strided_slice %130 {offsets = [0, 0, 8], sizes = [3, 6, 6], strides = [1, 1, 1]} : vector<3x6x16xf32> to vector<3x6x6xf32>
    %cst_45 = arith.constant 0.0360007733 : f32
    %163 = vector.broadcast %cst_45 : f32 to vector<3x6x6xf32>
    %164 = arith.mulf %163, %162 : vector<3x6x6xf32>
    %165 = arith.addf %161, %164 : vector<3x6x6xf32>
    %166 = vector.extract_strided_slice %130 {offsets = [0, 0, 9], sizes = [3, 6, 6], strides = [1, 1, 1]} : vector<3x6x16xf32> to vector<3x6x6xf32>
    %cst_46 = arith.constant 0.00759875821 : f32
    %167 = vector.broadcast %cst_46 : f32 to vector<3x6x6xf32>
    %168 = arith.mulf %167, %166 : vector<3x6x6xf32>
    %169 = arith.addf %165, %168 : vector<3x6x6xf32>
    %170 = vector.extract_strided_slice %130 {offsets = [0, 0, 10], sizes = [3, 6, 6], strides = [1, 1, 1]} : vector<3x6x16xf32> to vector<3x6x6xf32>
    %cst_47 = arith.constant 0.00102838012 : f32
    %171 = vector.broadcast %cst_47 : f32 to vector<3x6x6xf32>
    %172 = arith.mulf %171, %170 : vector<3x6x6xf32>
    %173 = arith.addf %169, %172 : vector<3x6x6xf32>
    %174 = arith.mulf %0, %0 : vector<3x16x16xf32>
    %175 = vector.extract_strided_slice %174 {offsets = [0, 0, 0], sizes = [3, 6, 16], strides = [1, 1, 1]} : vector<3x16x16xf32> to vector<3x6x16xf32>
    %cst_48 = arith.constant 0.00102838012 : f32
    %176 = vector.broadcast %cst_48 : f32 to vector<3x6x16xf32>
    %177 = arith.mulf %176, %175 : vector<3x6x16xf32>
    %178 = vector.extract_strided_slice %174 {offsets = [0, 1, 0], sizes = [3, 6, 16], strides = [1, 1, 1]} : vector<3x16x16xf32> to vector<3x6x16xf32>
    %cst_49 = arith.constant 0.00759875821 : f32
    %179 = vector.broadcast %cst_49 : f32 to vector<3x6x16xf32>
    %180 = arith.mulf %179, %178 : vector<3x6x16xf32>
    %181 = arith.addf %177, %180 : vector<3x6x16xf32>
    %182 = vector.extract_strided_slice %174 {offsets = [0, 2, 0], sizes = [3, 6, 16], strides = [1, 1, 1]} : vector<3x16x16xf32> to vector<3x6x16xf32>
    %cst_50 = arith.constant 0.0360007733 : f32
    %183 = vector.broadcast %cst_50 : f32 to vector<3x6x16xf32>
    %184 = arith.mulf %183, %182 : vector<3x6x16xf32>
    %185 = arith.addf %181, %184 : vector<3x6x16xf32>
    %186 = vector.extract_strided_slice %174 {offsets = [0, 3, 0], sizes = [3, 6, 16], strides = [1, 1, 1]} : vector<3x16x16xf32> to vector<3x6x16xf32>
    %cst_51 = arith.constant 0.109360687 : f32
    %187 = vector.broadcast %cst_51 : f32 to vector<3x6x16xf32>
    %188 = arith.mulf %187, %186 : vector<3x6x16xf32>
    %189 = arith.addf %185, %188 : vector<3x6x16xf32>
    %190 = vector.extract_strided_slice %174 {offsets = [0, 4, 0], sizes = [3, 6, 16], strides = [1, 1, 1]} : vector<3x16x16xf32> to vector<3x6x16xf32>
    %cst_52 = arith.constant 0.213005543 : f32
    %191 = vector.broadcast %cst_52 : f32 to vector<3x6x16xf32>
    %192 = arith.mulf %191, %190 : vector<3x6x16xf32>
    %193 = arith.addf %189, %192 : vector<3x6x16xf32>
    %194 = vector.extract_strided_slice %174 {offsets = [0, 5, 0], sizes = [3, 6, 16], strides = [1, 1, 1]} : vector<3x16x16xf32> to vector<3x6x16xf32>
    %cst_53 = arith.constant 0.266011715 : f32
    %195 = vector.broadcast %cst_53 : f32 to vector<3x6x16xf32>
    %196 = arith.mulf %195, %194 : vector<3x6x16xf32>
    %197 = arith.addf %193, %196 : vector<3x6x16xf32>
    %198 = vector.extract_strided_slice %174 {offsets = [0, 6, 0], sizes = [3, 6, 16], strides = [1, 1, 1]} : vector<3x16x16xf32> to vector<3x6x16xf32>
    %cst_54 = arith.constant 0.213005543 : f32
    %199 = vector.broadcast %cst_54 : f32 to vector<3x6x16xf32>
    %200 = arith.mulf %199, %198 : vector<3x6x16xf32>
    %201 = arith.addf %197, %200 : vector<3x6x16xf32>
    %202 = vector.extract_strided_slice %174 {offsets = [0, 7, 0], sizes = [3, 6, 16], strides = [1, 1, 1]} : vector<3x16x16xf32> to vector<3x6x16xf32>
    %cst_55 = arith.constant 0.109360687 : f32
    %203 = vector.broadcast %cst_55 : f32 to vector<3x6x16xf32>
    %204 = arith.mulf %203, %202 : vector<3x6x16xf32>
    %205 = arith.addf %201, %204 : vector<3x6x16xf32>
    %206 = vector.extract_strided_slice %174 {offsets = [0, 8, 0], sizes = [3, 6, 16], strides = [1, 1, 1]} : vector<3x16x16xf32> to vector<3x6x16xf32>
    %cst_56 = arith.constant 0.0360007733 : f32
    %207 = vector.broadcast %cst_56 : f32 to vector<3x6x16xf32>
    %208 = arith.mulf %207, %206 : vector<3x6x16xf32>
    %209 = arith.addf %205, %208 : vector<3x6x16xf32>
    %210 = vector.extract_strided_slice %174 {offsets = [0, 9, 0], sizes = [3, 6, 16], strides = [1, 1, 1]} : vector<3x16x16xf32> to vector<3x6x16xf32>
    %cst_57 = arith.constant 0.00759875821 : f32
    %211 = vector.broadcast %cst_57 : f32 to vector<3x6x16xf32>
    %212 = arith.mulf %211, %210 : vector<3x6x16xf32>
    %213 = arith.addf %209, %212 : vector<3x6x16xf32>
    %214 = vector.extract_strided_slice %174 {offsets = [0, 10, 0], sizes = [3, 6, 16], strides = [1, 1, 1]} : vector<3x16x16xf32> to vector<3x6x16xf32>
    %cst_58 = arith.constant 0.00102838012 : f32
    %215 = vector.broadcast %cst_58 : f32 to vector<3x6x16xf32>
    %216 = arith.mulf %215, %214 : vector<3x6x16xf32>
    %217 = arith.addf %213, %216 : vector<3x6x16xf32>
    %218 = vector.extract_strided_slice %217 {offsets = [0, 0, 0], sizes = [3, 6, 6], strides = [1, 1, 1]} : vector<3x6x16xf32> to vector<3x6x6xf32>
    %cst_59 = arith.constant 0.00102838012 : f32
    %219 = vector.broadcast %cst_59 : f32 to vector<3x6x6xf32>
    %220 = arith.mulf %219, %218 : vector<3x6x6xf32>
    %221 = vector.extract_strided_slice %217 {offsets = [0, 0, 1], sizes = [3, 6, 6], strides = [1, 1, 1]} : vector<3x6x16xf32> to vector<3x6x6xf32>
    %cst_60 = arith.constant 0.00759875821 : f32
    %222 = vector.broadcast %cst_60 : f32 to vector<3x6x6xf32>
    %223 = arith.mulf %222, %221 : vector<3x6x6xf32>
    %224 = arith.addf %220, %223 : vector<3x6x6xf32>
    %225 = vector.extract_strided_slice %217 {offsets = [0, 0, 2], sizes = [3, 6, 6], strides = [1, 1, 1]} : vector<3x6x16xf32> to vector<3x6x6xf32>
    %cst_61 = arith.constant 0.0360007733 : f32
    %226 = vector.broadcast %cst_61 : f32 to vector<3x6x6xf32>
    %227 = arith.mulf %226, %225 : vector<3x6x6xf32>
    %228 = arith.addf %224, %227 : vector<3x6x6xf32>
    %229 = vector.extract_strided_slice %217 {offsets = [0, 0, 3], sizes = [3, 6, 6], strides = [1, 1, 1]} : vector<3x6x16xf32> to vector<3x6x6xf32>
    %cst_62 = arith.constant 0.109360687 : f32
    %230 = vector.broadcast %cst_62 : f32 to vector<3x6x6xf32>
    %231 = arith.mulf %230, %229 : vector<3x6x6xf32>
    %232 = arith.addf %228, %231 : vector<3x6x6xf32>
    %233 = vector.extract_strided_slice %217 {offsets = [0, 0, 4], sizes = [3, 6, 6], strides = [1, 1, 1]} : vector<3x6x16xf32> to vector<3x6x6xf32>
    %cst_63 = arith.constant 0.213005543 : f32
    %234 = vector.broadcast %cst_63 : f32 to vector<3x6x6xf32>
    %235 = arith.mulf %234, %233 : vector<3x6x6xf32>
    %236 = arith.addf %232, %235 : vector<3x6x6xf32>
    %237 = vector.extract_strided_slice %217 {offsets = [0, 0, 5], sizes = [3, 6, 6], strides = [1, 1, 1]} : vector<3x6x16xf32> to vector<3x6x6xf32>
    %cst_64 = arith.constant 0.266011715 : f32
    %238 = vector.broadcast %cst_64 : f32 to vector<3x6x6xf32>
    %239 = arith.mulf %238, %237 : vector<3x6x6xf32>
    %240 = arith.addf %236, %239 : vector<3x6x6xf32>
    %241 = vector.extract_strided_slice %217 {offsets = [0, 0, 6], sizes = [3, 6, 6], strides = [1, 1, 1]} : vector<3x6x16xf32> to vector<3x6x6xf32>
    %cst_65 = arith.constant 0.213005543 : f32
    %242 = vector.broadcast %cst_65 : f32 to vector<3x6x6xf32>
    %243 = arith.mulf %242, %241 : vector<3x6x6xf32>
    %244 = arith.addf %240, %243 : vector<3x6x6xf32>
    %245 = vector.extract_strided_slice %217 {offsets = [0, 0, 7], sizes = [3, 6, 6], strides = [1, 1, 1]} : vector<3x6x16xf32> to vector<3x6x6xf32>
    %cst_66 = arith.constant 0.109360687 : f32
    %246 = vector.broadcast %cst_66 : f32 to vector<3x6x6xf32>
    %247 = arith.mulf %246, %245 : vector<3x6x6xf32>
    %248 = arith.addf %244, %247 : vector<3x6x6xf32>
    %249 = vector.extract_strided_slice %217 {offsets = [0, 0, 8], sizes = [3, 6, 6], strides = [1, 1, 1]} : vector<3x6x16xf32> to vector<3x6x6xf32>
    %cst_67 = arith.constant 0.0360007733 : f32
    %250 = vector.broadcast %cst_67 : f32 to vector<3x6x6xf32>
    %251 = arith.mulf %250, %249 : vector<3x6x6xf32>
    %252 = arith.addf %248, %251 : vector<3x6x6xf32>
    %253 = vector.extract_strided_slice %217 {offsets = [0, 0, 9], sizes = [3, 6, 6], strides = [1, 1, 1]} : vector<3x6x16xf32> to vector<3x6x6xf32>
    %cst_68 = arith.constant 0.00759875821 : f32
    %254 = vector.broadcast %cst_68 : f32 to vector<3x6x6xf32>
    %255 = arith.mulf %254, %253 : vector<3x6x6xf32>
    %256 = arith.addf %252, %255 : vector<3x6x6xf32>
    %257 = vector.extract_strided_slice %217 {offsets = [0, 0, 10], sizes = [3, 6, 6], strides = [1, 1, 1]} : vector<3x6x16xf32> to vector<3x6x6xf32>
    %cst_69 = arith.constant 0.00102838012 : f32
    %258 = vector.broadcast %cst_69 : f32 to vector<3x6x6xf32>
    %259 = arith.mulf %258, %257 : vector<3x6x6xf32>
    %260 = arith.addf %256, %259 : vector<3x6x6xf32>
    %261 = arith.mulf %87, %87 : vector<3x6x6xf32>
    %262 = arith.subf %260, %261 : vector<3x6x6xf32>
    %263 = arith.mulf %1, %1 : vector<3x16x16xf32>
    %264 = vector.extract_strided_slice %263 {offsets = [0, 0, 0], sizes = [3, 6, 16], strides = [1, 1, 1]} : vector<3x16x16xf32> to vector<3x6x16xf32>
    %cst_70 = arith.constant 0.00102838012 : f32
    %265 = vector.broadcast %cst_70 : f32 to vector<3x6x16xf32>
    %266 = arith.mulf %265, %264 : vector<3x6x16xf32>
    %267 = vector.extract_strided_slice %263 {offsets = [0, 1, 0], sizes = [3, 6, 16], strides = [1, 1, 1]} : vector<3x16x16xf32> to vector<3x6x16xf32>
    %cst_71 = arith.constant 0.00759875821 : f32
    %268 = vector.broadcast %cst_71 : f32 to vector<3x6x16xf32>
    %269 = arith.mulf %268, %267 : vector<3x6x16xf32>
    %270 = arith.addf %266, %269 : vector<3x6x16xf32>
    %271 = vector.extract_strided_slice %263 {offsets = [0, 2, 0], sizes = [3, 6, 16], strides = [1, 1, 1]} : vector<3x16x16xf32> to vector<3x6x16xf32>
    %cst_72 = arith.constant 0.0360007733 : f32
    %272 = vector.broadcast %cst_72 : f32 to vector<3x6x16xf32>
    %273 = arith.mulf %272, %271 : vector<3x6x16xf32>
    %274 = arith.addf %270, %273 : vector<3x6x16xf32>
    %275 = vector.extract_strided_slice %263 {offsets = [0, 3, 0], sizes = [3, 6, 16], strides = [1, 1, 1]} : vector<3x16x16xf32> to vector<3x6x16xf32>
    %cst_73 = arith.constant 0.109360687 : f32
    %276 = vector.broadcast %cst_73 : f32 to vector<3x6x16xf32>
    %277 = arith.mulf %276, %275 : vector<3x6x16xf32>
    %278 = arith.addf %274, %277 : vector<3x6x16xf32>
    %279 = vector.extract_strided_slice %263 {offsets = [0, 4, 0], sizes = [3, 6, 16], strides = [1, 1, 1]} : vector<3x16x16xf32> to vector<3x6x16xf32>
    %cst_74 = arith.constant 0.213005543 : f32
    %280 = vector.broadcast %cst_74 : f32 to vector<3x6x16xf32>
    %281 = arith.mulf %280, %279 : vector<3x6x16xf32>
    %282 = arith.addf %278, %281 : vector<3x6x16xf32>
    %283 = vector.extract_strided_slice %263 {offsets = [0, 5, 0], sizes = [3, 6, 16], strides = [1, 1, 1]} : vector<3x16x16xf32> to vector<3x6x16xf32>
    %cst_75 = arith.constant 0.266011715 : f32
    %284 = vector.broadcast %cst_75 : f32 to vector<3x6x16xf32>
    %285 = arith.mulf %284, %283 : vector<3x6x16xf32>
    %286 = arith.addf %282, %285 : vector<3x6x16xf32>
    %287 = vector.extract_strided_slice %263 {offsets = [0, 6, 0], sizes = [3, 6, 16], strides = [1, 1, 1]} : vector<3x16x16xf32> to vector<3x6x16xf32>
    %cst_76 = arith.constant 0.213005543 : f32
    %288 = vector.broadcast %cst_76 : f32 to vector<3x6x16xf32>
    %289 = arith.mulf %288, %287 : vector<3x6x16xf32>
    %290 = arith.addf %286, %289 : vector<3x6x16xf32>
    %291 = vector.extract_strided_slice %263 {offsets = [0, 7, 0], sizes = [3, 6, 16], strides = [1, 1, 1]} : vector<3x16x16xf32> to vector<3x6x16xf32>
    %cst_77 = arith.constant 0.109360687 : f32
    %292 = vector.broadcast %cst_77 : f32 to vector<3x6x16xf32>
    %293 = arith.mulf %292, %291 : vector<3x6x16xf32>
    %294 = arith.addf %290, %293 : vector<3x6x16xf32>
    %295 = vector.extract_strided_slice %263 {offsets = [0, 8, 0], sizes = [3, 6, 16], strides = [1, 1, 1]} : vector<3x16x16xf32> to vector<3x6x16xf32>
    %cst_78 = arith.constant 0.0360007733 : f32
    %296 = vector.broadcast %cst_78 : f32 to vector<3x6x16xf32>
    %297 = arith.mulf %296, %295 : vector<3x6x16xf32>
    %298 = arith.addf %294, %297 : vector<3x6x16xf32>
    %299 = vector.extract_strided_slice %263 {offsets = [0, 9, 0], sizes = [3, 6, 16], strides = [1, 1, 1]} : vector<3x16x16xf32> to vector<3x6x16xf32>
    %cst_79 = arith.constant 0.00759875821 : f32
    %300 = vector.broadcast %cst_79 : f32 to vector<3x6x16xf32>
    %301 = arith.mulf %300, %299 : vector<3x6x16xf32>
    %302 = arith.addf %298, %301 : vector<3x6x16xf32>
    %303 = vector.extract_strided_slice %263 {offsets = [0, 10, 0], sizes = [3, 6, 16], strides = [1, 1, 1]} : vector<3x16x16xf32> to vector<3x6x16xf32>
    %cst_80 = arith.constant 0.00102838012 : f32
    %304 = vector.broadcast %cst_80 : f32 to vector<3x6x16xf32>
    %305 = arith.mulf %304, %303 : vector<3x6x16xf32>
    %306 = arith.addf %302, %305 : vector<3x6x16xf32>
    %307 = vector.extract_strided_slice %306 {offsets = [0, 0, 0], sizes = [3, 6, 6], strides = [1, 1, 1]} : vector<3x6x16xf32> to vector<3x6x6xf32>
    %cst_81 = arith.constant 0.00102838012 : f32
    %308 = vector.broadcast %cst_81 : f32 to vector<3x6x6xf32>
    %309 = arith.mulf %308, %307 : vector<3x6x6xf32>
    %310 = vector.extract_strided_slice %306 {offsets = [0, 0, 1], sizes = [3, 6, 6], strides = [1, 1, 1]} : vector<3x6x16xf32> to vector<3x6x6xf32>
    %cst_82 = arith.constant 0.00759875821 : f32
    %311 = vector.broadcast %cst_82 : f32 to vector<3x6x6xf32>
    %312 = arith.mulf %311, %310 : vector<3x6x6xf32>
    %313 = arith.addf %309, %312 : vector<3x6x6xf32>
    %314 = vector.extract_strided_slice %306 {offsets = [0, 0, 2], sizes = [3, 6, 6], strides = [1, 1, 1]} : vector<3x6x16xf32> to vector<3x6x6xf32>
    %cst_83 = arith.constant 0.0360007733 : f32
    %315 = vector.broadcast %cst_83 : f32 to vector<3x6x6xf32>
    %316 = arith.mulf %315, %314 : vector<3x6x6xf32>
    %317 = arith.addf %313, %316 : vector<3x6x6xf32>
    %318 = vector.extract_strided_slice %306 {offsets = [0, 0, 3], sizes = [3, 6, 6], strides = [1, 1, 1]} : vector<3x6x16xf32> to vector<3x6x6xf32>
    %cst_84 = arith.constant 0.109360687 : f32
    %319 = vector.broadcast %cst_84 : f32 to vector<3x6x6xf32>
    %320 = arith.mulf %319, %318 : vector<3x6x6xf32>
    %321 = arith.addf %317, %320 : vector<3x6x6xf32>
    %322 = vector.extract_strided_slice %306 {offsets = [0, 0, 4], sizes = [3, 6, 6], strides = [1, 1, 1]} : vector<3x6x16xf32> to vector<3x6x6xf32>
    %cst_85 = arith.constant 0.213005543 : f32
    %323 = vector.broadcast %cst_85 : f32 to vector<3x6x6xf32>
    %324 = arith.mulf %323, %322 : vector<3x6x6xf32>
    %325 = arith.addf %321, %324 : vector<3x6x6xf32>
    %326 = vector.extract_strided_slice %306 {offsets = [0, 0, 5], sizes = [3, 6, 6], strides = [1, 1, 1]} : vector<3x6x16xf32> to vector<3x6x6xf32>
    %cst_86 = arith.constant 0.266011715 : f32
    %327 = vector.broadcast %cst_86 : f32 to vector<3x6x6xf32>
    %328 = arith.mulf %327, %326 : vector<3x6x6xf32>
    %329 = arith.addf %325, %328 : vector<3x6x6xf32>
    %330 = vector.extract_strided_slice %306 {offsets = [0, 0, 6], sizes = [3, 6, 6], strides = [1, 1, 1]} : vector<3x6x16xf32> to vector<3x6x6xf32>
    %cst_87 = arith.constant 0.213005543 : f32
    %331 = vector.broadcast %cst_87 : f32 to vector<3x6x6xf32>
    %332 = arith.mulf %331, %330 : vector<3x6x6xf32>
    %333 = arith.addf %329, %332 : vector<3x6x6xf32>
    %334 = vector.extract_strided_slice %306 {offsets = [0, 0, 7], sizes = [3, 6, 6], strides = [1, 1, 1]} : vector<3x6x16xf32> to vector<3x6x6xf32>
    %cst_88 = arith.constant 0.109360687 : f32
    %335 = vector.broadcast %cst_88 : f32 to vector<3x6x6xf32>
    %336 = arith.mulf %335, %334 : vector<3x6x6xf32>
    %337 = arith.addf %333, %336 : vector<3x6x6xf32>
    %338 = vector.extract_strided_slice %306 {offsets = [0, 0, 8], sizes = [3, 6, 6], strides = [1, 1, 1]} : vector<3x6x16xf32> to vector<3x6x6xf32>
    %cst_89 = arith.constant 0.0360007733 : f32
    %339 = vector.broadcast %cst_89 : f32 to vector<3x6x6xf32>
    %340 = arith.mulf %339, %338 : vector<3x6x6xf32>
    %341 = arith.addf %337, %340 : vector<3x6x6xf32>
    %342 = vector.extract_strided_slice %306 {offsets = [0, 0, 9], sizes = [3, 6, 6], strides = [1, 1, 1]} : vector<3x6x16xf32> to vector<3x6x6xf32>
    %cst_90 = arith.constant 0.00759875821 : f32
    %343 = vector.broadcast %cst_90 : f32 to vector<3x6x6xf32>
    %344 = arith.mulf %343, %342 : vector<3x6x6xf32>
    %345 = arith.addf %341, %344 : vector<3x6x6xf32>
    %346 = vector.extract_strided_slice %306 {offsets = [0, 0, 10], sizes = [3, 6, 6], strides = [1, 1, 1]} : vector<3x6x16xf32> to vector<3x6x6xf32>
    %cst_91 = arith.constant 0.00102838012 : f32
    %347 = vector.broadcast %cst_91 : f32 to vector<3x6x6xf32>
    %348 = arith.mulf %347, %346 : vector<3x6x6xf32>
    %349 = arith.addf %345, %348 : vector<3x6x6xf32>
    %350 = arith.mulf %173, %173 : vector<3x6x6xf32>
    %351 = arith.subf %349, %350 : vector<3x6x6xf32>
    %352 = arith.mulf %0, %1 : vector<3x16x16xf32>
    %353 = vector.extract_strided_slice %352 {offsets = [0, 0, 0], sizes = [3, 6, 16], strides = [1, 1, 1]} : vector<3x16x16xf32> to vector<3x6x16xf32>
    %cst_92 = arith.constant 0.00102838012 : f32
    %354 = vector.broadcast %cst_92 : f32 to vector<3x6x16xf32>
    %355 = arith.mulf %354, %353 : vector<3x6x16xf32>
    %356 = vector.extract_strided_slice %352 {offsets = [0, 1, 0], sizes = [3, 6, 16], strides = [1, 1, 1]} : vector<3x16x16xf32> to vector<3x6x16xf32>
    %cst_93 = arith.constant 0.00759875821 : f32
    %357 = vector.broadcast %cst_93 : f32 to vector<3x6x16xf32>
    %358 = arith.mulf %357, %356 : vector<3x6x16xf32>
    %359 = arith.addf %355, %358 : vector<3x6x16xf32>
    %360 = vector.extract_strided_slice %352 {offsets = [0, 2, 0], sizes = [3, 6, 16], strides = [1, 1, 1]} : vector<3x16x16xf32> to vector<3x6x16xf32>
    %cst_94 = arith.constant 0.0360007733 : f32
    %361 = vector.broadcast %cst_94 : f32 to vector<3x6x16xf32>
    %362 = arith.mulf %361, %360 : vector<3x6x16xf32>
    %363 = arith.addf %359, %362 : vector<3x6x16xf32>
    %364 = vector.extract_strided_slice %352 {offsets = [0, 3, 0], sizes = [3, 6, 16], strides = [1, 1, 1]} : vector<3x16x16xf32> to vector<3x6x16xf32>
    %cst_95 = arith.constant 0.109360687 : f32
    %365 = vector.broadcast %cst_95 : f32 to vector<3x6x16xf32>
    %366 = arith.mulf %365, %364 : vector<3x6x16xf32>
    %367 = arith.addf %363, %366 : vector<3x6x16xf32>
    %368 = vector.extract_strided_slice %352 {offsets = [0, 4, 0], sizes = [3, 6, 16], strides = [1, 1, 1]} : vector<3x16x16xf32> to vector<3x6x16xf32>
    %cst_96 = arith.constant 0.213005543 : f32
    %369 = vector.broadcast %cst_96 : f32 to vector<3x6x16xf32>
    %370 = arith.mulf %369, %368 : vector<3x6x16xf32>
    %371 = arith.addf %367, %370 : vector<3x6x16xf32>
    %372 = vector.extract_strided_slice %352 {offsets = [0, 5, 0], sizes = [3, 6, 16], strides = [1, 1, 1]} : vector<3x16x16xf32> to vector<3x6x16xf32>
    %cst_97 = arith.constant 0.266011715 : f32
    %373 = vector.broadcast %cst_97 : f32 to vector<3x6x16xf32>
    %374 = arith.mulf %373, %372 : vector<3x6x16xf32>
    %375 = arith.addf %371, %374 : vector<3x6x16xf32>
    %376 = vector.extract_strided_slice %352 {offsets = [0, 6, 0], sizes = [3, 6, 16], strides = [1, 1, 1]} : vector<3x16x16xf32> to vector<3x6x16xf32>
    %cst_98 = arith.constant 0.213005543 : f32
    %377 = vector.broadcast %cst_98 : f32 to vector<3x6x16xf32>
    %378 = arith.mulf %377, %376 : vector<3x6x16xf32>
    %379 = arith.addf %375, %378 : vector<3x6x16xf32>
    %380 = vector.extract_strided_slice %352 {offsets = [0, 7, 0], sizes = [3, 6, 16], strides = [1, 1, 1]} : vector<3x16x16xf32> to vector<3x6x16xf32>
    %cst_99 = arith.constant 0.109360687 : f32
    %381 = vector.broadcast %cst_99 : f32 to vector<3x6x16xf32>
    %382 = arith.mulf %381, %380 : vector<3x6x16xf32>
    %383 = arith.addf %379, %382 : vector<3x6x16xf32>
    %384 = vector.extract_strided_slice %352 {offsets = [0, 8, 0], sizes = [3, 6, 16], strides = [1, 1, 1]} : vector<3x16x16xf32> to vector<3x6x16xf32>
    %cst_100 = arith.constant 0.0360007733 : f32
    %385 = vector.broadcast %cst_100 : f32 to vector<3x6x16xf32>
    %386 = arith.mulf %385, %384 : vector<3x6x16xf32>
    %387 = arith.addf %383, %386 : vector<3x6x16xf32>
    %388 = vector.extract_strided_slice %352 {offsets = [0, 9, 0], sizes = [3, 6, 16], strides = [1, 1, 1]} : vector<3x16x16xf32> to vector<3x6x16xf32>
    %cst_101 = arith.constant 0.00759875821 : f32
    %389 = vector.broadcast %cst_101 : f32 to vector<3x6x16xf32>
    %390 = arith.mulf %389, %388 : vector<3x6x16xf32>
    %391 = arith.addf %387, %390 : vector<3x6x16xf32>
    %392 = vector.extract_strided_slice %352 {offsets = [0, 10, 0], sizes = [3, 6, 16], strides = [1, 1, 1]} : vector<3x16x16xf32> to vector<3x6x16xf32>
    %cst_102 = arith.constant 0.00102838012 : f32
    %393 = vector.broadcast %cst_102 : f32 to vector<3x6x16xf32>
    %394 = arith.mulf %393, %392 : vector<3x6x16xf32>
    %395 = arith.addf %391, %394 : vector<3x6x16xf32>
    %396 = vector.extract_strided_slice %395 {offsets = [0, 0, 0], sizes = [3, 6, 6], strides = [1, 1, 1]} : vector<3x6x16xf32> to vector<3x6x6xf32>
    %cst_103 = arith.constant 0.00102838012 : f32
    %397 = vector.broadcast %cst_103 : f32 to vector<3x6x6xf32>
    %398 = arith.mulf %397, %396 : vector<3x6x6xf32>
    %399 = vector.extract_strided_slice %395 {offsets = [0, 0, 1], sizes = [3, 6, 6], strides = [1, 1, 1]} : vector<3x6x16xf32> to vector<3x6x6xf32>
    %cst_104 = arith.constant 0.00759875821 : f32
    %400 = vector.broadcast %cst_104 : f32 to vector<3x6x6xf32>
    %401 = arith.mulf %400, %399 : vector<3x6x6xf32>
    %402 = arith.addf %398, %401 : vector<3x6x6xf32>
    %403 = vector.extract_strided_slice %395 {offsets = [0, 0, 2], sizes = [3, 6, 6], strides = [1, 1, 1]} : vector<3x6x16xf32> to vector<3x6x6xf32>
    %cst_105 = arith.constant 0.0360007733 : f32
    %404 = vector.broadcast %cst_105 : f32 to vector<3x6x6xf32>
    %405 = arith.mulf %404, %403 : vector<3x6x6xf32>
    %406 = arith.addf %402, %405 : vector<3x6x6xf32>
    %407 = vector.extract_strided_slice %395 {offsets = [0, 0, 3], sizes = [3, 6, 6], strides = [1, 1, 1]} : vector<3x6x16xf32> to vector<3x6x6xf32>
    %cst_106 = arith.constant 0.109360687 : f32
    %408 = vector.broadcast %cst_106 : f32 to vector<3x6x6xf32>
    %409 = arith.mulf %408, %407 : vector<3x6x6xf32>
    %410 = arith.addf %406, %409 : vector<3x6x6xf32>
    %411 = vector.extract_strided_slice %395 {offsets = [0, 0, 4], sizes = [3, 6, 6], strides = [1, 1, 1]} : vector<3x6x16xf32> to vector<3x6x6xf32>
    %cst_107 = arith.constant 0.213005543 : f32
    %412 = vector.broadcast %cst_107 : f32 to vector<3x6x6xf32>
    %413 = arith.mulf %412, %411 : vector<3x6x6xf32>
    %414 = arith.addf %410, %413 : vector<3x6x6xf32>
    %415 = vector.extract_strided_slice %395 {offsets = [0, 0, 5], sizes = [3, 6, 6], strides = [1, 1, 1]} : vector<3x6x16xf32> to vector<3x6x6xf32>
    %cst_108 = arith.constant 0.266011715 : f32
    %416 = vector.broadcast %cst_108 : f32 to vector<3x6x6xf32>
    %417 = arith.mulf %416, %415 : vector<3x6x6xf32>
    %418 = arith.addf %414, %417 : vector<3x6x6xf32>
    %419 = vector.extract_strided_slice %395 {offsets = [0, 0, 6], sizes = [3, 6, 6], strides = [1, 1, 1]} : vector<3x6x16xf32> to vector<3x6x6xf32>
    %cst_109 = arith.constant 0.213005543 : f32
    %420 = vector.broadcast %cst_109 : f32 to vector<3x6x6xf32>
    %421 = arith.mulf %420, %419 : vector<3x6x6xf32>
    %422 = arith.addf %418, %421 : vector<3x6x6xf32>
    %423 = vector.extract_strided_slice %395 {offsets = [0, 0, 7], sizes = [3, 6, 6], strides = [1, 1, 1]} : vector<3x6x16xf32> to vector<3x6x6xf32>
    %cst_110 = arith.constant 0.109360687 : f32
    %424 = vector.broadcast %cst_110 : f32 to vector<3x6x6xf32>
    %425 = arith.mulf %424, %423 : vector<3x6x6xf32>
    %426 = arith.addf %422, %425 : vector<3x6x6xf32>
    %427 = vector.extract_strided_slice %395 {offsets = [0, 0, 8], sizes = [3, 6, 6], strides = [1, 1, 1]} : vector<3x6x16xf32> to vector<3x6x6xf32>
    %cst_111 = arith.constant 0.0360007733 : f32
    %428 = vector.broadcast %cst_111 : f32 to vector<3x6x6xf32>
    %429 = arith.mulf %428, %427 : vector<3x6x6xf32>
    %430 = arith.addf %426, %429 : vector<3x6x6xf32>
    %431 = vector.extract_strided_slice %395 {offsets = [0, 0, 9], sizes = [3, 6, 6], strides = [1, 1, 1]} : vector<3x6x16xf32> to vector<3x6x6xf32>
    %cst_112 = arith.constant 0.00759875821 : f32
    %432 = vector.broadcast %cst_112 : f32 to vector<3x6x6xf32>
    %433 = arith.mulf %432, %431 : vector<3x6x6xf32>
    %434 = arith.addf %430, %433 : vector<3x6x6xf32>
    %435 = vector.extract_strided_slice %395 {offsets = [0, 0, 10], sizes = [3, 6, 6], strides = [1, 1, 1]} : vector<3x6x16xf32> to vector<3x6x6xf32>
    %cst_113 = arith.constant 0.00102838012 : f32
    %436 = vector.broadcast %cst_113 : f32 to vector<3x6x6xf32>
    %437 = arith.mulf %436, %435 : vector<3x6x6xf32>
    %438 = arith.addf %434, %437 : vector<3x6x6xf32>
    %439 = arith.mulf %87, %173 : vector<3x6x6xf32>
    %440 = arith.subf %438, %439 : vector<3x6x6xf32>
    %cst_114 = arith.constant 2.000000e+00 : f32
    %441 = vector.broadcast %cst_114 : f32 to vector<3x6x6xf32>
    %442 = arith.mulf %441, %440 : vector<3x6x6xf32>
    %cst_115 = arith.constant 5.852250e+01 : f32
    %443 = vector.broadcast %cst_115 : f32 to vector<3x6x6xf32>
    %444 = arith.addf %442, %443 : vector<3x6x6xf32>
    %445 = arith.addf %262, %351 : vector<3x6x6xf32>
    %cst_116 = arith.constant 5.852250e+01 : f32
    %446 = vector.broadcast %cst_116 : f32 to vector<3x6x6xf32>
    %447 = arith.addf %445, %446 : vector<3x6x6xf32>
    %448 = arith.divf %444, %447 : vector<3x6x6xf32>
    %cst_117 = arith.constant 2.000000e+00 : f32
    %449 = vector.broadcast %cst_117 : f32 to vector<3x6x6xf32>
    %450 = arith.mulf %449, %87 : vector<3x6x6xf32>
    %451 = arith.mulf %450, %173 : vector<3x6x6xf32>
    %cst_118 = arith.constant 6.502500e+00 : f32
    %452 = vector.broadcast %cst_118 : f32 to vector<3x6x6xf32>
    %453 = arith.addf %451, %452 : vector<3x6x6xf32>
    %454 = arith.mulf %87, %87 : vector<3x6x6xf32>
    %455 = arith.mulf %173, %173 : vector<3x6x6xf32>
    %456 = arith.addf %454, %455 : vector<3x6x6xf32>
    %cst_119 = arith.constant 6.502500e+00 : f32
    %457 = vector.broadcast %cst_119 : f32 to vector<3x6x6xf32>
    %458 = arith.addf %456, %457 : vector<3x6x6xf32>
    %459 = arith.divf %453, %458 : vector<3x6x6xf32>
    %460 = arith.mulf %459, %448 : vector<3x6x6xf32>
    %cst_120 = arith.constant dense<0.000000e+00> : vector<3x6xf32>
    %461 = vector.multi_reduction <add>, %460, %cst_120 [2] : vector<3x6x6xf32> to vector<3x6xf32>
    %462 = vector.shape_cast %461 : vector<3x6xf32> to vector<3x6x1xf32>
    %cst_121 = arith.constant dense<0.000000e+00> : vector<3x1xf32>
    %463 = vector.multi_reduction <add>, %462, %cst_121 [1] : vector<3x6x1xf32> to vector<3x1xf32>
    %464 = vector.shape_cast %463 : vector<3x1xf32> to vector<3x1x1xf32>
    %cst_122 = arith.constant 0.027777778 : f32
    %465 = vector.broadcast %cst_122 : f32 to vector<3x1x1xf32>
    %466 = arith.mulf %464, %465 : vector<3x1x1xf32>
    %c0_123 = arith.constant 0 : index
    %c0_124 = arith.constant 0 : index
    %c0_125 = arith.constant 0 : index
    %467 = vector.load %arg3[%c0_123, %c0_124, %c0_125] : memref<3x1x1xf32, #tpu.memory_space<vmem>>, vector<3x1x1xf32>
    tpu.vector_store %arg3[%c0_123, %c0_124, %c0_125], %466 {strides = array<i32>} : memref<3x1x1xf32, #tpu.memory_space<vmem>>, vector<3x1x1xf32>,
    return
  }
  func.func @transform_0(%arg0: i32) -> (i32, i32, i32) {
    %c0_i32 = arith.constant 0 : i32
    %c0_i32_0 = arith.constant 0 : i32
    %c0_i32_1 = arith.constant 0 : i32
    return %arg0, %c0_i32, %c0_i32_0 : i32, i32, i32
  }
  func.func @transform_1(%arg0: i32) -> (i32, i32, i32) {
    %c0_i32 = arith.constant 0 : i32
    %c0_i32_0 = arith.constant 0 : i32
    %c0_i32_1 = arith.constant 0 : i32
    return %arg0, %c0_i32, %c0_i32_0 : i32, i32, i32
  }
  func.func @transform_2(%arg0: i32) -> (i32, i32, i32) {
    %c0_i32 = arith.constant 0 : i32
    %c0_i32_0 = arith.constant 0 : i32
    %c0_i32_1 = arith.constant 0 : i32
    return %arg0, %c0_i32, %c0_i32_0 : i32, i32, i32
  }
}

</mosaic_0001>

<llo_original>
// kernel: ssim_pallas.1
$region0: #{ssim_pallas.1}
  #allocation0 [shape = 'u32[]', space=smem, size = 0x4, offset = 0x4, fixed_abs, tag = 'smem constant byte address 0x4 - core index']
  #allocation1 [shape = 'u32[144,128]{1,0:T(1,128)}', space=vmem, size = 0x12000, scoped, tag = 'internal scratch']
  %s0 = inlined_call_operand.hbm [shape: f32[12,16,16], index: 0, kind: input, shape index: {}]
  %s1 = inlined_call_operand.hbm [shape: f32[12,16,16], index: 1, kind: input, shape index: {}]
  %s2 = inlined_call_operand.vmem [shape: f32[12,1,1], index: 2, kind: output, shape index: {}]
  %s3 = sld [smem:[#allocation0]]
  $region49: #{ssim_pallas.1} parent=0
    _
  %s5 = ssub.s32 1, %s3
  %s6 = scalar_select 0, %s5, %s3
  $region1: #{ssim_pallas.1} parent=0
    #allocation2 [shape = 'u8[49152]{0}', space=vmem, size = 0xc000, scoped, tag = 'input window, operand 0']
    #allocation3 [shape = 's32[2]{0}', space=sflag, size = 0x8, scoped, tag = 'scoped memory for ssim_pallas.1']
    #allocation4 [shape = 'u8[49152]{0}', space=vmem, size = 0xc000, scoped, tag = 'input window, operand 1']
    #allocation5 [shape = 's32[2]{0}', space=sflag, size = 0x8, scoped, tag = 'scoped memory for ssim_pallas.1']
    %7 = vsyncpa [#allocation3], 0
    %s8 = scalar_lea.sflag [#allocation3], 1
    %9 = vsyncpa %s8, 0
    %10 = vsyncpa [#allocation5], 0
    %s11 = scalar_lea.sflag [#allocation5], 1
    %12 = vsyncpa %s11, 0
    loop: start=0, step=1, limit=6
    $region2: #{ssim_pallas.1} parent=1 // loop_pre_header
      _
    $region3: #{ssim_pallas.1} parent=1 // loop_header
      %s14 = sphi 0, %s18
      %p15 = scmp.ge.s32.totalorder %s14, 6
      %s24 = sphi 0, %s26
      %s27 = sphi 0, %s24
      %s28 = sphi 0, %s27
      %s44 = sphi 0, %s28
      %s50 = sphi 0, %s52
      %s53 = sphi 0, %s50
      %s54 = sphi 0, %s53
      %s70 = sphi 0, %s54
      %s76 = sphi 0, %s78
      %s79 = sphi 0, %s76
      %s80 = sphi 0, %s79
      %s96 = sphi 0, %s80
    $region4: #{ssim_pallas.1} parent=1 // loop_header_branch
      %17 = sbr.rel (%p15) target = $region8
    $region5: #{ssim_pallas.1} parent=1 // loop_body
      %s19 = ssub.s32 %s14, 1
      %s20 = ssub.s32 %s14, 2
      %s21 = sadd.s32 %s14, 1
      %s22 = ssub.s32 %s14, %s21
      %p23 = scmp.eq.s32.totalorder %s22, 0
      %s25 = sadd.s32 %s24, 1
      %s26 = scalar_select %p23, %s24, %s25
      %p29 = pneg %p23
      %p30 = scmp.eq.s32.totalorder %s14, 3
      %p31 = por %p29, %p30
      %p32 = scmp.ne.s32.totalorder %s24, %s27
      %p33 = scmp.eq.s32.totalorder %s14, 0
      %p34 = por %p32, %p33
      %p35 = scmp.ne.s32.totalorder %s24, %s27
      %p36 = scmp.eq.s32.totalorder %s19, 3
      %p37 = por %p35, %p36
      %p38 = scmp.ne.s32.totalorder %s27, %s28
      %p39 = scmp.eq.s32.totalorder %s19, 0
      %p40 = por %p38, %p39
      %p41 = scmp.ne.s32.totalorder %s27, %s28
      %p42 = scmp.eq.s32.totalorder %s20, 3
      %p43 = por %p41, %p42
      %p45 = scmp.ne.s32.totalorder %s28, %s44
      %p46 = scmp.eq.s32.totalorder %s20, 0
      %p47 = por %p45, %p46
      %s48 = ssub.s32 %s14, %s21
      %p49 = scmp.eq.s32.totalorder %s48, 0
      %s51 = sadd.s32 %s50, 1
      %s52 = scalar_select %p49, %s50, %s51
      %p55 = pneg %p49
      %p56 = scmp.eq.s32.totalorder %s14, 3
      %p57 = por %p55, %p56
      %p58 = scmp.ne.s32.totalorder %s50, %s53
      %p59 = scmp.eq.s32.totalorder %s14, 0
      %p60 = por %p58, %p59
      %p61 = scmp.ne.s32.totalorder %s50, %s53
      %p62 = scmp.eq.s32.totalorder %s19, 3
      %p63 = por %p61, %p62
      %p64 = scmp.ne.s32.totalorder %s53, %s54
      %p65 = scmp.eq.s32.totalorder %s19, 0
      %p66 = por %p64, %p65
      %p67 = scmp.ne.s32.totalorder %s53, %s54
      %p68 = scmp.eq.s32.totalorder %s20, 3
      %p69 = por %p67, %p68
      %p71 = scmp.ne.s32.totalorder %s54, %s70
      %p72 = scmp.eq.s32.totalorder %s20, 0
      %p73 = por %p71, %p72
      %s74 = ssub.s32 %s14, %s21
      %p75 = scmp.eq.s32.totalorder %s74, 0
      %s77 = sadd.s32 %s76, 1
      %s78 = scalar_select %p75, %s76, %s77
      %p81 = pneg %p75
      %p82 = scmp.eq.s32.totalorder %s14, 3
      %p83 = por %p81, %p82
      %p84 = scmp.ne.s32.totalorder %s76, %s79
      %p85 = scmp.eq.s32.totalorder %s14, 0
      %p86 = por %p84, %p85
      %p87 = scmp.ne.s32.totalorder %s76, %s79
      %p88 = scmp.eq.s32.totalorder %s19, 3
      %p89 = por %p87, %p88
      %p90 = scmp.ne.s32.totalorder %s79, %s80
      %p91 = scmp.eq.s32.totalorder %s19, 0
      %p92 = por %p90, %p91
      %p93 = scmp.ne.s32.totalorder %s79, %s80
      %p94 = scmp.eq.s32.totalorder %s20, 3
      %p95 = por %p93, %p94
      %p97 = scmp.ne.s32.totalorder %s80, %s96
      %p98 = scmp.eq.s32.totalorder %s20, 0
      %p99 = por %p97, %p98
      %p100 = scmp.le.s32.totalorder 1, %s14
      %p101 = scmp.lt.s32.totalorder %s14, 5
      %p102 = pnand %p100, %p101
      %p103 = pneg %p102
      // Predicated region
      $region9: #{ssim_pallas.1} parent=5 // pred_check
        _
      $region10: #{ssim_pallas.1} parent=5 // pred_check_branch
        %105 = sbr.rel (%p102) target = $region12
      $region11: #{ssim_pallas.1} parent=5 // pred_region
        %s106 = ssub.s32 %s14, 1
      $region12: #{ssim_pallas.1} parent=5 // pred_fallthru
        _
      %p107 = scmp.lt.s32.totalorder %s14, 4
      // Predicated region
      $region13: #{ssim_pallas.1} parent=5 // pred_check
        %p108 = pneg %p107
      $region14: #{ssim_pallas.1} parent=5 // pred_check_branch
        %110 = sbr.rel (%p108) target = $region16
      $region15: #{ssim_pallas.1} parent=5 // pred_region
        // Predicated region
        $region17: #{ssim_pallas.1} parent=15 // pred_check
          %p111 = pneg %p34
        $region18: #{ssim_pallas.1} parent=15 // pred_check_branch
          %113 = sbr.rel (%p111) target = $region20
        $region19: #{ssim_pallas.1} parent=15 // pred_region
          %s114 = sand.u32 %s24, 1
          %s115 = scalar_lea.sflag [#allocation3], %s114
          %s116 = sand.u32 %s24, 1
          %s117 = smul.addr %s116, 48
          %s118 = scalar_lea.vmem [#allocation2], %s117
          %s119 = smul.u32 3, %s14
          %s121 = ssub.s32 768, 768
          %122 = vsyncadd %s115, %s121
          %s123 = smul.addr %s119, 2
          %s124 = smul.addr %s123, 128
          %s125 = scalar_lea.hbm %s0, %s124
          %s126 = sshll.u32 %s118, 4
          %s127 = int_to_ptr.vmem [resolvable:$true] %s126
          %132 = dma.hbm_to_vmem [thread:$0]  %s125, 768, %s127, %s115, 128, 128, 8
        $region20: #{ssim_pallas.1} parent=15 // pred_fallthru
          _
        // Predicated region
        $region21: #{ssim_pallas.1} parent=15 // pred_check
          %p133 = pneg %p60
        $region22: #{ssim_pallas.1} parent=15 // pred_check_branch
          %135 = sbr.rel (%p133) target = $region24
        $region23: #{ssim_pallas.1} parent=15 // pred_region
          %s136 = sand.u32 %s50, 1
          %s137 = scalar_lea.sflag [#allocation5], %s136
          %s138 = sand.u32 %s50, 1
          %s139 = smul.addr %s138, 48
          %s140 = scalar_lea.vmem [#allocation4], %s139
          %s141 = smul.u32 3, %s14
          %s143 = ssub.s32 768, 768
          %144 = vsyncadd %s137, %s143
          %s145 = smul.addr %s141, 2
          %s146 = smul.addr %s145, 128
          %s147 = scalar_lea.hbm %s1, %s146
          %s148 = sshll.u32 %s140, 4
          %s149 = int_to_ptr.vmem [resolvable:$true] %s148
          %154 = dma.hbm_to_vmem [thread:$0]  %s147, 768, %s149, %s137, 128, 128, 8
        $region24: #{ssim_pallas.1} parent=15 // pred_fallthru
          _
      $region16: #{ssim_pallas.1} parent=5 // pred_fallthru
        _
      %p155 = scmp.le.s32.totalorder 1, %s14
      %p156 = scmp.lt.s32.totalorder %s14, 5
      %p157 = pnand %p155, %p156
      %p158 = pneg %p157
      // Predicated region
      $region25: #{ssim_pallas.1} parent=5 // pred_check
        _
      $region26: #{ssim_pallas.1} parent=5 // pred_check_branch
        %160 = sbr.rel (%p157) target = $region28
      $region27: #{ssim_pallas.1} parent=5 // pred_region
        %s161 = ssub.s32 %s14, 1
        %s162 = sand.u32 %s27, 1
        %s163 = scalar_lea.sflag [#allocation3], %s162
        %s164 = sand.u32 %s27, 1
        %s165 = smul.addr %s164, 48
        %s166 = scalar_lea.vmem [#allocation2], %s165
        // Predicated region
        $region29: #{ssim_pallas.1} parent=27 // pred_check
          %p167 = pneg %p40
        $region30: #{ssim_pallas.1} parent=27 // pred_check_branch
          %169 = sbr.rel (%p167) target = $region32
        $region31: #{ssim_pallas.1} parent=27 // pred_region
          %170 = dma.done %s163, 768
        $region32: #{ssim_pallas.1} parent=27 // pred_fallthru
          _
        %s171 = sand.u32 %s53, 1
        %s172 = scalar_lea.sflag [#allocation5], %s171
        %s173 = sand.u32 %s53, 1
        %s174 = smul.addr %s173, 48
        %s175 = scalar_lea.vmem [#allocation4], %s174
        // Predicated region
        $region33: #{ssim_pallas.1} parent=27 // pred_check
          %p176 = pneg %p66
        $region34: #{ssim_pallas.1} parent=27 // pred_check_branch
          %178 = sbr.rel (%p176) target = $region36
        $region35: #{ssim_pallas.1} parent=27 // pred_region
          %179 = dma.done %s172, 768
        $region36: #{ssim_pallas.1} parent=27 // pred_fallthru
          _
        %s180 = sand.u32 %s27, 1
        %s181 = scalar_lea.sflag [#allocation3], %s180
        %s182 = sand.u32 %s27, 1
        %s183 = smul.addr %s182, 48
        %s184 = scalar_lea.vmem [#allocation2], %s183
        %p185 = pneg %p40
        %p186 = pneg %p37
        %s187 = sand.u32 %s53, 1
        %s188 = scalar_lea.sflag [#allocation5], %s187
        %s189 = sand.u32 %s53, 1
        %s190 = smul.addr %s189, 48
        %s191 = scalar_lea.vmem [#allocation4], %s190
        %p192 = pneg %p66
        %p193 = pneg %p63
        %p194 = pneg %p92
        %p195 = pneg %p89
        %s196 = smul.u32 3, %s19
        %p197 = scmp.lt.s32.totalorder %s196, 11
        %s198 = scalar_select %p197, %s196, 11
        %s199 = scalar_lea.vmem %s2, %s198
        %s200 = smul.u32 3, %s19
        %s201 = smul.u32 3, %s19
        %s202 = smul.u32 3, %s19
        %p203 = scmp.lt.s32.totalorder %s202, 11
        %s204 = scalar_select %p203, %s202, 11
        %s205 = scalar_lea.vmem %s2, %s204
        %s206 = smul.u32 3, %s19
        %v207 = vld [vmem:[%s166] sm:$0xff]
        %v208 = vld [vmem:[%s166 + $0x8] sm:$0xff]
        %v209 = vld [vmem:[%s166 + $0x10] sm:$0xff]
        %v210 = vld [vmem:[%s166 + $0x18] sm:$0xff]
        %v211 = vld [vmem:[%s166 + $0x20] sm:$0xff]
        %v212 = vld [vmem:[%s166 + $0x28] sm:$0xff]
        %v213 = vld [vmem:[%s175] sm:$0xff]
        %v214 = vld [vmem:[%s175 + $0x8] sm:$0xff]
        %v215 = vld [vmem:[%s175 + $0x10] sm:$0xff]
        %v216 = vld [vmem:[%s175 + $0x18] sm:$0xff]
        %v217 = vld [vmem:[%s175 + $0x20] sm:$0xff]
        %v218 = vld [vmem:[%s175 + $0x28] sm:$0xff]
        %v219 = vmul.f32 %v207, 0.0010283801
        %v220 = vmul.f32 %v209, 0.0010283801
        %v221 = vmul.f32 %v211, 0.0010283801
        %v222 = vmul.f32 %v207, 0.007598758
        %v223 = vmul.f32 %v209, 0.007598758
        %v224 = vmul.f32 %v211, 0.007598758
        %v228 = vrot.slane %v222, 1
        %v229 = vrot.slane %v223, 1
        %v230 = vrot.slane %v224, 1
        %v234 = vadd.f32 %v219, %v228
        %v235 = vadd.f32 %v220, %v229
        %v236 = vadd.f32 %v221, %v230
        %v237 = vmul.f32 %v207, 0.036000773
        %v238 = vmul.f32 %v209, 0.036000773
        %v239 = vmul.f32 %v211, 0.036000773
        %v243 = vrot.slane %v237, 2
        %v244 = vrot.slane %v238, 2
        %v245 = vrot.slane %v239, 2
        %v249 = vadd.f32 %v234, %v243
        %v250 = vadd.f32 %v235, %v244
        %v251 = vadd.f32 %v236, %v245
        %v252 = vmul.f32 %v207, 0.10936069
        %v253 = vmul.f32 %v208, 0.10936069
        %v254 = vmul.f32 %v209, 0.10936069
        %v255 = vmul.f32 %v210, 0.10936069
        %v256 = vmul.f32 %v211, 0.10936069
        %v257 = vmul.f32 %v212, 0.10936069
        %vm264 = vcmask 1044480
        %v265 = vrot.slane %v252, 3
        %v266 = vrot.slane %v253, 3
        %v267 = vsel %vm264, %v265, %v266
        %v268 = vrot.slane %v254, 3
        %v269 = vrot.slane %v255, 3
        %v270 = vsel %vm264, %v268, %v269
        %v271 = vrot.slane %v256, 3
        %v272 = vrot.slane %v257, 3
        %v273 = vsel %vm264, %v271, %v272
        %v277 = vadd.f32 %v249, %v267
        %v278 = vadd.f32 %v250, %v270
        %v279 = vadd.f32 %v251, %v273
        %v280 = vmul.f32 %v207, 0.21300554
        %v281 = vmul.f32 %v208, 0.21300554
        %v282 = vmul.f32 %v209, 0.21300554
        %v283 = vmul.f32 %v210, 0.21300554
        %v284 = vmul.f32 %v211, 0.21300554
        %v285 = vmul.f32 %v212, 0.21300554
        %vm292 = vcmask 1043456
        %v293 = vrot.slane %v280, 4
        %v294 = vrot.slane %v281, 4
        %v295 = vsel %vm292, %v293, %v294
        %v296 = vrot.slane %v282, 4
        %v297 = vrot.slane %v283, 4
        %v298 = vsel %vm292, %v296, %v297
        %v299 = vrot.slane %v284, 4
        %v300 = vrot.slane %v285, 4
        %v301 = vsel %vm292, %v299, %v300
        %v305 = vadd.f32 %v277, %v295
        %v306 = vadd.f32 %v278, %v298
        %v307 = vadd.f32 %v279, %v301
        %v308 = vmul.f32 %v207, 0.26601171
        %v309 = vmul.f32 %v208, 0.26601171
        %v310 = vmul.f32 %v209, 0.26601171
        %v311 = vmul.f32 %v210, 0.26601171
        %v312 = vmul.f32 %v211, 0.26601171
        %v313 = vmul.f32 %v212, 0.26601171
        %vm320 = vcmask 1042432
        %v321 = vrot.slane %v308, 5
        %v322 = vrot.slane %v309, 5
        %v323 = vsel %vm320, %v321, %v322
        %v324 = vrot.slane %v310, 5
        %v325 = vrot.slane %v311, 5
        %v326 = vsel %vm320, %v324, %v325
        %v327 = vrot.slane %v312, 5
        %v328 = vrot.slane %v313, 5
        %v329 = vsel %vm320, %v327, %v328
        %v333 = vadd.f32 %v305, %v323
        %v334 = vadd.f32 %v306, %v326
        %v335 = vadd.f32 %v307, %v329
        %vm336 = vcmask 1041408
        %v337 = vrot.slane %v280, 6
        %v338 = vrot.slane %v281, 6
        %v339 = vsel %vm336, %v337, %v338
        %v340 = vrot.slane %v282, 6
        %v341 = vrot.slane %v283, 6
        %v342 = vsel %vm336, %v340, %v341
        %v343 = vrot.slane %v284, 6
        %v344 = vrot.slane %v285, 6
        %v345 = vsel %vm336, %v343, %v344
        %v349 = vadd.f32 %v333, %v339
        %v350 = vadd.f32 %v334, %v342
        %v351 = vadd.f32 %v335, %v345
        %vm352 = vcmask 1040384
        %v353 = vrot.slane %v252, 7
        %v354 = vrot.slane %v253, 7
        %v355 = vsel %vm352, %v353, %v354
        %v356 = vrot.slane %v254, 7
        %v357 = vrot.slane %v255, 7
        %v358 = vsel %vm352, %v356, %v357
        %v359 = vrot.slane %v256, 7
        %v360 = vrot.slane %v257, 7
        %v361 = vsel %vm352, %v359, %v360
        %v365 = vadd.f32 %v349, %v355
        %v366 = vadd.f32 %v350, %v358
        %v367 = vadd.f32 %v351, %v361
        %v368 = vmul.f32 %v208, 0.036000773
        %v369 = vmul.f32 %v210, 0.036000773
        %v370 = vmul.f32 %v212, 0.036000773
        %v371 = vadd.f32 %v365, %v368
        %v372 = vadd.f32 %v366, %v369
        %v373 = vadd.f32 %v367, %v370
        %v374 = vmul.f32 %v208, 0.007598758
        %v375 = vmul.f32 %v210, 0.007598758
        %v376 = vmul.f32 %v212, 0.007598758
        %v380 = vrot.slane %v374, 1
        %v381 = vrot.slane %v375, 1
        %v382 = vrot.slane %v376, 1
        %v386 = vadd.f32 %v371, %v380
        %v387 = vadd.f32 %v372, %v381
        %v388 = vadd.f32 %v373, %v382
        %v389 = vmul.f32 %v208, 0.0010283801
        %v390 = vmul.f32 %v210, 0.0010283801
        %v391 = vmul.f32 %v212, 0.0010283801
        %v395 = vrot.slane %v389, 2
        %v396 = vrot.slane %v390, 2
        %v397 = vrot.slane %v391, 2
        %v401 = vadd.f32 %v386, %v395
        %v402 = vadd.f32 %v387, %v396
        %v403 = vadd.f32 %v388, %v397
        %v404 = vmul.f32 %v401, 0.0010283801
        %v405 = vmul.f32 %v402, 0.0010283801
        %v406 = vmul.f32 %v403, 0.0010283801
        %v407 = vmul.f32 %v401, 0.007598758
        %v408 = vmul.f32 %v402, 0.007598758
        %v409 = vmul.f32 %v403, 0.007598758
        %413 = vrot.lane.b32.xlu0 %v407, 127
        %v414 = vpop.permute.xlu0 %413
        %415 = vrot.lane.b32.xlu0 %v408, 127
        %v416 = vpop.permute.xlu0 %415
        %417 = vrot.lane.b32.xlu0 %v409, 127
        %v418 = vpop.permute.xlu0 %417
        %v422 = vadd.f32 %v404, %v414
        %v423 = vadd.f32 %v405, %v416
        %v424 = vadd.f32 %v406, %v418
        %v425 = vmul.f32 %v401, 0.036000773
        %v426 = vmul.f32 %v402, 0.036000773
        %v427 = vmul.f32 %v403, 0.036000773
        %431 = vrot.lane.b32.xlu0 %v425, 126
        %v432 = vpop.permute.xlu0 %431
        %433 = vrot.lane.b32.xlu0 %v426, 126
        %v434 = vpop.permute.xlu0 %433
        %435 = vrot.lane.b32.xlu0 %v427, 126
        %v436 = vpop.permute.xlu0 %435
        %v440 = vadd.f32 %v422, %v432
        %v441 = vadd.f32 %v423, %v434
        %v442 = vadd.f32 %v424, %v436
        %v443 = vmul.f32 %v401, 0.10936069
        %v444 = vmul.f32 %v402, 0.10936069
        %v445 = vmul.f32 %v403, 0.10936069
        %449 = vrot.lane.b32.xlu0 %v443, 125
        %v450 = vpop.permute.xlu0 %449
        %451 = vrot.lane.b32.xlu0 %v444, 125
        %v452 = vpop.permute.xlu0 %451
        %453 = vrot.lane.b32.xlu0 %v445, 125
        %v454 = vpop.permute.xlu0 %453
        %v458 = vadd.f32 %v440, %v450
        %v459 = vadd.f32 %v441, %v452
        %v460 = vadd.f32 %v442, %v454
        %v461 = vmul.f32 %v401, 0.21300554
        %v462 = vmul.f32 %v402, 0.21300554
        %v463 = vmul.f32 %v403, 0.21300554
        %467 = vrot.lane.b32.xlu0 %v461, 124
        %v468 = vpop.permute.xlu0 %467
        %469 = vrot.lane.b32.xlu0 %v462, 124
        %v470 = vpop.permute.xlu0 %469
        %471 = vrot.lane.b32.xlu0 %v463, 124
        %v472 = vpop.permute.xlu0 %471
        %v476 = vadd.f32 %v458, %v468
        %v477 = vadd.f32 %v459, %v470
        %v478 = vadd.f32 %v460, %v472
        %v479 = vmul.f32 %v401, 0.26601171
        %v480 = vmul.f32 %v402, 0.26601171
        %v481 = vmul.f32 %v403, 0.26601171
        %485 = vrot.lane.b32.xlu0 %v479, 123
        %v486 = vpop.permute.xlu0 %485
        %487 = vrot.lane.b32.xlu0 %v480, 123
        %v488 = vpop.permute.xlu0 %487
        %489 = vrot.lane.b32.xlu0 %v481, 123
        %v490 = vpop.permute.xlu0 %489
        %v494 = vadd.f32 %v476, %v486
        %v495 = vadd.f32 %v477, %v488
        %v496 = vadd.f32 %v478, %v490
        %497 = vrot.lane.b32.xlu0 %v461, 122
        %v498 = vpop.permute.xlu0 %497
        %499 = vrot.lane.b32.xlu0 %v462, 122
        %v500 = vpop.permute.xlu0 %499
        %501 = vrot.lane.b32.xlu0 %v463, 122
        %v502 = vpop.permute.xlu0 %501
        %v506 = vadd.f32 %v494, %v498
        %v507 = vadd.f32 %v495, %v500
        %v508 = vadd.f32 %v496, %v502
        %509 = vrot.lane.b32.xlu0 %v443, 121
        %v510 = vpop.permute.xlu0 %509
        %511 = vrot.lane.b32.xlu0 %v444, 121
        %v512 = vpop.permute.xlu0 %511
        %513 = vrot.lane.b32.xlu0 %v445, 121
        %v514 = vpop.permute.xlu0 %513
        %v518 = vadd.f32 %v506, %v510
        %v519 = vadd.f32 %v507, %v512
        %v520 = vadd.f32 %v508, %v514
        %521 = vrot.lane.b32.xlu0 %v425, 120
        %v522 = vpop.permute.xlu0 %521
        %523 = vrot.lane.b32.xlu0 %v426, 120
        %v524 = vpop.permute.xlu0 %523
        %525 = vrot.lane.b32.xlu0 %v427, 120
        %v526 = vpop.permute.xlu0 %525
        %v530 = vadd.f32 %v518, %v522
        %v531 = vadd.f32 %v519, %v524
        %v532 = vadd.f32 %v520, %v526
        %533 = vrot.lane.b32.xlu0 %v407, 119
        %v534 = vpop.permute.xlu0 %533
        %535 = vrot.lane.b32.xlu0 %v408, 119
        %v536 = vpop.permute.xlu0 %535
        %537 = vrot.lane.b32.xlu0 %v409, 119
        %v538 = vpop.permute.xlu0 %537
        %v542 = vadd.f32 %v530, %v534
        %v543 = vadd.f32 %v531, %v536
        %v544 = vadd.f32 %v532, %v538
        %548 = vrot.lane.b32.xlu0 %v404, 118
        %v549 = vpop.permute.xlu0 %548
        %550 = vrot.lane.b32.xlu0 %v405, 118
        %v551 = vpop.permute.xlu0 %550
        %552 = vrot.lane.b32.xlu0 %v406, 118
        %v553 = vpop.permute.xlu0 %552
        %v557 = vadd.f32 %v542, %v549
        %v558 = vadd.f32 %v543, %v551
        %v559 = vadd.f32 %v544, %v553
        %v560 = vmul.f32 %v213, 0.0010283801
        %v561 = vmul.f32 %v215, 0.0010283801
        %v562 = vmul.f32 %v217, 0.0010283801
        %v563 = vmul.f32 %v213, 0.007598758
        %v564 = vmul.f32 %v215, 0.007598758
        %v565 = vmul.f32 %v217, 0.007598758
        %v569 = vrot.slane %v563, 1
        %v570 = vrot.slane %v564, 1
        %v571 = vrot.slane %v565, 1
        %v575 = vadd.f32 %v560, %v569
        %v576 = vadd.f32 %v561, %v570
        %v577 = vadd.f32 %v562, %v571
        %v578 = vmul.f32 %v213, 0.036000773
        %v579 = vmul.f32 %v215, 0.036000773
        %v580 = vmul.f32 %v217, 0.036000773
        %v584 = vrot.slane %v578, 2
        %v585 = vrot.slane %v579, 2
        %v586 = vrot.slane %v580, 2
        %v590 = vadd.f32 %v575, %v584
        %v591 = vadd.f32 %v576, %v585
        %v592 = vadd.f32 %v577, %v586
        %v593 = vmul.f32 %v213, 0.10936069
        %v594 = vmul.f32 %v214, 0.10936069
        %v595 = vmul.f32 %v215, 0.10936069
        %v596 = vmul.f32 %v216, 0.10936069
        %v597 = vmul.f32 %v217, 0.10936069
        %v598 = vmul.f32 %v218, 0.10936069
        %v605 = vrot.slane %v593, 3
        %v606 = vrot.slane %v594, 3
        %v607 = vsel %vm264, %v605, %v606
        %v608 = vrot.slane %v595, 3
        %v609 = vrot.slane %v596, 3
        %v610 = vsel %vm264, %v608, %v609
        %v611 = vrot.slane %v597, 3
        %v612 = vrot.slane %v598, 3
        %v613 = vsel %vm264, %v611, %v612
        %v617 = vadd.f32 %v590, %v607
        %v618 = vadd.f32 %v591, %v610
        %v619 = vadd.f32 %v592, %v613
        %v620 = vmul.f32 %v213, 0.21300554
        %v621 = vmul.f32 %v214, 0.21300554
        %v622 = vmul.f32 %v215, 0.21300554
        %v623 = vmul.f32 %v216, 0.21300554
        %v624 = vmul.f32 %v217, 0.21300554
        %v625 = vmul.f32 %v218, 0.21300554
        %v632 = vrot.slane %v620, 4
        %v633 = vrot.slane %v621, 4
        %v634 = vsel %vm292, %v632, %v633
        %v635 = vrot.slane %v622, 4
        %v636 = vrot.slane %v623, 4
        %v637 = vsel %vm292, %v635, %v636
        %v638 = vrot.slane %v624, 4
        %v639 = vrot.slane %v625, 4
        %v640 = vsel %vm292, %v638, %v639
        %v644 = vadd.f32 %v617, %v634
        %v645 = vadd.f32 %v618, %v637
        %v646 = vadd.f32 %v619, %v640
        %v647 = vmul.f32 %v213, 0.26601171
        %v648 = vmul.f32 %v214, 0.26601171
        %v649 = vmul.f32 %v215, 0.26601171
        %v650 = vmul.f32 %v216, 0.26601171
        %v651 = vmul.f32 %v217, 0.26601171
        %v652 = vmul.f32 %v218, 0.26601171
        %v659 = vrot.slane %v647, 5
        %v660 = vrot.slane %v648, 5
        %v661 = vsel %vm320, %v659, %v660
        %v662 = vrot.slane %v649, 5
        %v663 = vrot.slane %v650, 5
        %v664 = vsel %vm320, %v662, %v663
        %v665 = vrot.slane %v651, 5
        %v666 = vrot.slane %v652, 5
        %v667 = vsel %vm320, %v665, %v666
        %v671 = vadd.f32 %v644, %v661
        %v672 = vadd.f32 %v645, %v664
        %v673 = vadd.f32 %v646, %v667
        %v674 = vrot.slane %v620, 6
        %v675 = vrot.slane %v621, 6
        %v676 = vsel %vm336, %v674, %v675
        %v677 = vrot.slane %v622, 6
        %v678 = vrot.slane %v623, 6
        %v679 = vsel %vm336, %v677, %v678
        %v680 = vrot.slane %v624, 6
        %v681 = vrot.slane %v625, 6
        %v682 = vsel %vm336, %v680, %v681
        %v686 = vadd.f32 %v671, %v676
        %v687 = vadd.f32 %v672, %v679
        %v688 = vadd.f32 %v673, %v682
        %v689 = vrot.slane %v593, 7
        %v690 = vrot.slane %v594, 7
        %v691 = vsel %vm352, %v689, %v690
        %v692 = vrot.slane %v595, 7
        %v693 = vrot.slane %v596, 7
        %v694 = vsel %vm352, %v692, %v693
        %v695 = vrot.slane %v597, 7
        %v696 = vrot.slane %v598, 7
        %v697 = vsel %vm352, %v695, %v696
        %v701 = vadd.f32 %v686, %v691
        %v702 = vadd.f32 %v687, %v694
        %v703 = vadd.f32 %v688, %v697
        %v704 = vmul.f32 %v214, 0.036000773
        %v705 = vmul.f32 %v216, 0.036000773
        %v706 = vmul.f32 %v218, 0.036000773
        %v707 = vadd.f32 %v701, %v704
        %v708 = vadd.f32 %v702, %v705
        %v709 = vadd.f32 %v703, %v706
        %v710 = vmul.f32 %v214, 0.007598758
        %v711 = vmul.f32 %v216, 0.007598758
        %v712 = vmul.f32 %v218, 0.007598758
        %v716 = vrot.slane %v710, 1
        %v717 = vrot.slane %v711, 1
        %v718 = vrot.slane %v712, 1
        %v722 = vadd.f32 %v707, %v716
        %v723 = vadd.f32 %v708, %v717
        %v724 = vadd.f32 %v709, %v718
        %v725 = vmul.f32 %v214, 0.0010283801
        %v726 = vmul.f32 %v216, 0.0010283801
        %v727 = vmul.f32 %v218, 0.0010283801
        %v731 = vrot.slane %v725, 2
        %v732 = vrot.slane %v726, 2
        %v733 = vrot.slane %v727, 2
        %v737 = vadd.f32 %v722, %v731
        %v738 = vadd.f32 %v723, %v732
        %v739 = vadd.f32 %v724, %v733
        %v740 = vmul.f32 %v737, 0.0010283801
        %v741 = vmul.f32 %v738, 0.0010283801
        %v742 = vmul.f32 %v739, 0.0010283801
        %v743 = vmul.f32 %v737, 0.007598758
        %v744 = vmul.f32 %v738, 0.007598758
        %v745 = vmul.f32 %v739, 0.007598758
        %749 = vrot.lane.b32.xlu0 %v743, 127
        %v750 = vpop.permute.xlu0 %749
        %751 = vrot.lane.b32.xlu0 %v744, 127
        %v752 = vpop.permute.xlu0 %751
        %753 = vrot.lane.b32.xlu0 %v745, 127
        %v754 = vpop.permute.xlu0 %753
        %v758 = vadd.f32 %v740, %v750
        %v759 = vadd.f32 %v741, %v752
        %v760 = vadd.f32 %v742, %v754
        %v761 = vmul.f32 %v737, 0.036000773
        %v762 = vmul.f32 %v738, 0.036000773
        %v763 = vmul.f32 %v739, 0.036000773
        %767 = vrot.lane.b32.xlu0 %v761, 126
        %v768 = vpop.permute.xlu0 %767
        %769 = vrot.lane.b32.xlu0 %v762, 126
        %v770 = vpop.permute.xlu0 %769
        %771 = vrot.lane.b32.xlu0 %v763, 126
        %v772 = vpop.permute.xlu0 %771
        %v776 = vadd.f32 %v758, %v768
        %v777 = vadd.f32 %v759, %v770
        %v778 = vadd.f32 %v760, %v772
        %v779 = vmul.f32 %v737, 0.10936069
        %v780 = vmul.f32 %v738, 0.10936069
        %v781 = vmul.f32 %v739, 0.10936069
        %785 = vrot.lane.b32.xlu0 %v779, 125
        %v786 = vpop.permute.xlu0 %785
        %787 = vrot.lane.b32.xlu0 %v780, 125
        %v788 = vpop.permute.xlu0 %787
        %789 = vrot.lane.b32.xlu0 %v781, 125
        %v790 = vpop.permute.xlu0 %789
        %v794 = vadd.f32 %v776, %v786
        %v795 = vadd.f32 %v777, %v788
        %v796 = vadd.f32 %v778, %v790
        %v797 = vmul.f32 %v737, 0.21300554
        %v798 = vmul.f32 %v738, 0.21300554
        %v799 = vmul.f32 %v739, 0.21300554
        %803 = vrot.lane.b32.xlu0 %v797, 124
        %v804 = vpop.permute.xlu0 %803
        %805 = vrot.lane.b32.xlu0 %v798, 124
        %v806 = vpop.permute.xlu0 %805
        %807 = vrot.lane.b32.xlu0 %v799, 124
        %v808 = vpop.permute.xlu0 %807
        %v812 = vadd.f32 %v794, %v804
        %v813 = vadd.f32 %v795, %v806
        %v814 = vadd.f32 %v796, %v808
        %v815 = vmul.f32 %v737, 0.26601171
        %v816 = vmul.f32 %v738, 0.26601171
        %v817 = vmul.f32 %v739, 0.26601171
        %821 = vrot.lane.b32.xlu0 %v815, 123
        %v822 = vpop.permute.xlu0 %821
        %823 = vrot.lane.b32.xlu0 %v816, 123
        %v824 = vpop.permute.xlu0 %823
        %825 = vrot.lane.b32.xlu0 %v817, 123
        %v826 = vpop.permute.xlu0 %825
        %v830 = vadd.f32 %v812, %v822
        %v831 = vadd.f32 %v813, %v824
        %v832 = vadd.f32 %v814, %v826
        %833 = vrot.lane.b32.xlu0 %v797, 122
        %v834 = vpop.permute.xlu0 %833
        %835 = vrot.lane.b32.xlu0 %v798, 122
        %v836 = vpop.permute.xlu0 %835
        %837 = vrot.lane.b32.xlu0 %v799, 122
        %v838 = vpop.permute.xlu0 %837
        %v842 = vadd.f32 %v830, %v834
        %v843 = vadd.f32 %v831, %v836
        %v844 = vadd.f32 %v832, %v838
        %845 = vrot.lane.b32.xlu0 %v779, 121
        %v846 = vpop.permute.xlu0 %845
        %847 = vrot.lane.b32.xlu0 %v780, 121
        %v848 = vpop.permute.xlu0 %847
        %849 = vrot.lane.b32.xlu0 %v781, 121
        %v850 = vpop.permute.xlu0 %849
        %v854 = vadd.f32 %v842, %v846
        %v855 = vadd.f32 %v843, %v848
        %v856 = vadd.f32 %v844, %v850
        %857 = vrot.lane.b32.xlu0 %v761, 120
        %v858 = vpop.permute.xlu0 %857
        %859 = vrot.lane.b32.xlu0 %v762, 120
        %v860 = vpop.permute.xlu0 %859
        %861 = vrot.lane.b32.xlu0 %v763, 120
        %v862 = vpop.permute.xlu0 %861
        %v866 = vadd.f32 %v854, %v858
        %v867 = vadd.f32 %v855, %v860
        %v868 = vadd.f32 %v856, %v862
        %869 = vrot.lane.b32.xlu0 %v743, 119
        %v870 = vpop.permute.xlu0 %869
        %871 = vrot.lane.b32.xlu0 %v744, 119
        %v872 = vpop.permute.xlu0 %871
        %873 = vrot.lane.b32.xlu0 %v745, 119
        %v874 = vpop.permute.xlu0 %873
        %v878 = vadd.f32 %v866, %v870
        %v879 = vadd.f32 %v867, %v872
        %v880 = vadd.f32 %v868, %v874
        %884 = vrot.lane.b32.xlu0 %v740, 118
        %v885 = vpop.permute.xlu0 %884
        %886 = vrot.lane.b32.xlu0 %v741, 118
        %v887 = vpop.permute.xlu0 %886
        %888 = vrot.lane.b32.xlu0 %v742, 118
        %v889 = vpop.permute.xlu0 %888
        %v893 = vadd.f32 %v878, %v885
        %v894 = vadd.f32 %v879, %v887
        %v895 = vadd.f32 %v880, %v889
        %v896 = vmul.f32 %v207, %v207
        %v897 = vmul.f32 %v208, %v208
        %v898 = vmul.f32 %v209, %v209
        %v899 = vmul.f32 %v210, %v210
        %v900 = vmul.f32 %v211, %v211
        %v901 = vmul.f32 %v212, %v212
        %v902 = vmul.f32 %v896, 0.0010283801
        %v903 = vmul.f32 %v898, 0.0010283801
        %v904 = vmul.f32 %v900, 0.0010283801
        %v905 = vmul.f32 %v896, 0.007598758
        %v906 = vmul.f32 %v898, 0.007598758
        %v907 = vmul.f32 %v900, 0.007598758
        %v911 = vrot.slane %v905, 1
        %v912 = vrot.slane %v906, 1
        %v913 = vrot.slane %v907, 1
        %v917 = vadd.f32 %v902, %v911
        %v918 = vadd.f32 %v903, %v912
        %v919 = vadd.f32 %v904, %v913
        %v920 = vmul.f32 %v896, 0.036000773
        %v921 = vmul.f32 %v898, 0.036000773
        %v922 = vmul.f32 %v900, 0.036000773
        %v926 = vrot.slane %v920, 2
        %v927 = vrot.slane %v921, 2
        %v928 = vrot.slane %v922, 2
        %v932 = vadd.f32 %v917, %v926
        %v933 = vadd.f32 %v918, %v927
        %v934 = vadd.f32 %v919, %v928
        %v935 = vmul.f32 %v896, 0.10936069
        %v936 = vmul.f32 %v897, 0.10936069
        %v937 = vmul.f32 %v898, 0.10936069
        %v938 = vmul.f32 %v899, 0.10936069
        %v939 = vmul.f32 %v900, 0.10936069
        %v940 = vmul.f32 %v901, 0.10936069
        %v947 = vrot.slane %v935, 3
        %v948 = vrot.slane %v936, 3
        %v949 = vsel %vm264, %v947, %v948
        %v950 = vrot.slane %v937, 3
        %v951 = vrot.slane %v938, 3
        %v952 = vsel %vm264, %v950, %v951
        %v953 = vrot.slane %v939, 3
        %v954 = vrot.slane %v940, 3
        %v955 = vsel %vm264, %v953, %v954
        %v959 = vadd.f32 %v932, %v949
        %v960 = vadd.f32 %v933, %v952
        %v961 = vadd.f32 %v934, %v955
        %v962 = vmul.f32 %v896, 0.21300554
        %v963 = vmul.f32 %v897, 0.21300554
        %v964 = vmul.f32 %v898, 0.21300554
        %v965 = vmul.f32 %v899, 0.21300554
        %v966 = vmul.f32 %v900, 0.21300554
        %v967 = vmul.f32 %v901, 0.21300554
        %v974 = vrot.slane %v962, 4
        %v975 = vrot.slane %v963, 4
        %v976 = vsel %vm292, %v974, %v975
        %v977 = vrot.slane %v964, 4
        %v978 = vrot.slane %v965, 4
        %v979 = vsel %vm292, %v977, %v978
        %v980 = vrot.slane %v966, 4
        %v981 = vrot.slane %v967, 4
        %v982 = vsel %vm292, %v980, %v981
        %v986 = vadd.f32 %v959, %v976
        %v987 = vadd.f32 %v960, %v979
        %v988 = vadd.f32 %v961, %v982
        %v989 = vmul.f32 %v896, 0.26601171
        %v990 = vmul.f32 %v897, 0.26601171
        %v991 = vmul.f32 %v898, 0.26601171
        %v992 = vmul.f32 %v899, 0.26601171
        %v993 = vmul.f32 %v900, 0.26601171
        %v994 = vmul.f32 %v901, 0.26601171
        %v1001 = vrot.slane %v989, 5
        %v1002 = vrot.slane %v990, 5
        %v1003 = vsel %vm320, %v1001, %v1002
        %v1004 = vrot.slane %v991, 5
        %v1005 = vrot.slane %v992, 5
        %v1006 = vsel %vm320, %v1004, %v1005
        %v1007 = vrot.slane %v993, 5
        %v1008 = vrot.slane %v994, 5
        %v1009 = vsel %vm320, %v1007, %v1008
        %v1013 = vadd.f32 %v986, %v1003
        %v1014 = vadd.f32 %v987, %v1006
        %v1015 = vadd.f32 %v988, %v1009
        %v1016 = vrot.slane %v962, 6
        %v1017 = vrot.slane %v963, 6
        %v1018 = vsel %vm336, %v1016, %v1017
        %v1019 = vrot.slane %v964, 6
        %v1020 = vrot.slane %v965, 6
        %v1021 = vsel %vm336, %v1019, %v1020
        %v1022 = vrot.slane %v966, 6
        %v1023 = vrot.slane %v967, 6
        %v1024 = vsel %vm336, %v1022, %v1023
        %v1028 = vadd.f32 %v1013, %v1018
        %v1029 = vadd.f32 %v1014, %v1021
        %v1030 = vadd.f32 %v1015, %v1024
        %v1031 = vrot.slane %v935, 7
        %v1032 = vrot.slane %v936, 7
        %v1033 = vsel %vm352, %v1031, %v1032
        %v1034 = vrot.slane %v937, 7
        %v1035 = vrot.slane %v938, 7
        %v1036 = vsel %vm352, %v1034, %v1035
        %v1037 = vrot.slane %v939, 7
        %v1038 = vrot.slane %v940, 7
        %v1039 = vsel %vm352, %v1037, %v1038
        %v1043 = vadd.f32 %v1028, %v1033
        %v1044 = vadd.f32 %v1029, %v1036
        %v1045 = vadd.f32 %v1030, %v1039
        %v1046 = vmul.f32 %v897, 0.036000773
        %v1047 = vmul.f32 %v899, 0.036000773
        %v1048 = vmul.f32 %v901, 0.036000773
        %v1049 = vadd.f32 %v1043, %v1046
        %v1050 = vadd.f32 %v1044, %v1047
        %v1051 = vadd.f32 %v1045, %v1048
        %v1052 = vmul.f32 %v897, 0.007598758
        %v1053 = vmul.f32 %v899, 0.007598758
        %v1054 = vmul.f32 %v901, 0.007598758
        %v1058 = vrot.slane %v1052, 1
        %v1059 = vrot.slane %v1053, 1
        %v1060 = vrot.slane %v1054, 1
        %v1064 = vadd.f32 %v1049, %v1058
        %v1065 = vadd.f32 %v1050, %v1059
        %v1066 = vadd.f32 %v1051, %v1060
        %v1067 = vmul.f32 %v897, 0.0010283801
        %v1068 = vmul.f32 %v899, 0.0010283801
        %v1069 = vmul.f32 %v901, 0.0010283801
        %v1073 = vrot.slane %v1067, 2
        %v1074 = vrot.slane %v1068, 2
        %v1075 = vrot.slane %v1069, 2
        %v1079 = vadd.f32 %v1064, %v1073
        %v1080 = vadd.f32 %v1065, %v1074
        %v1081 = vadd.f32 %v1066, %v1075
        %v1082 = vmul.f32 %v1079, 0.0010283801
        %v1083 = vmul.f32 %v1080, 0.0010283801
        %v1084 = vmul.f32 %v1081, 0.0010283801
        %v1085 = vmul.f32 %v1079, 0.007598758
        %v1086 = vmul.f32 %v1080, 0.007598758
        %v1087 = vmul.f32 %v1081, 0.007598758
        %1091 = vrot.lane.b32.xlu0 %v1085, 127
        %v1092 = vpop.permute.xlu0 %1091
        %1093 = vrot.lane.b32.xlu0 %v1086, 127
        %v1094 = vpop.permute.xlu0 %1093
        %1095 = vrot.lane.b32.xlu0 %v1087, 127
        %v1096 = vpop.permute.xlu0 %1095
        %v1100 = vadd.f32 %v1082, %v1092
        %v1101 = vadd.f32 %v1083, %v1094
        %v1102 = vadd.f32 %v1084, %v1096
        %v1103 = vmul.f32 %v1079, 0.036000773
        %v1104 = vmul.f32 %v1080, 0.036000773
        %v1105 = vmul.f32 %v1081, 0.036000773
        %1109 = vrot.lane.b32.xlu0 %v1103, 126
        %v1110 = vpop.permute.xlu0 %1109
        %1111 = vrot.lane.b32.xlu0 %v1104, 126
        %v1112 = vpop.permute.xlu0 %1111
        %1113 = vrot.lane.b32.xlu0 %v1105, 126
        %v1114 = vpop.permute.xlu0 %1113
        %v1118 = vadd.f32 %v1100, %v1110
        %v1119 = vadd.f32 %v1101, %v1112
        %v1120 = vadd.f32 %v1102, %v1114
        %v1121 = vmul.f32 %v1079, 0.10936069
        %v1122 = vmul.f32 %v1080, 0.10936069
        %v1123 = vmul.f32 %v1081, 0.10936069
        %1127 = vrot.lane.b32.xlu0 %v1121, 125
        %v1128 = vpop.permute.xlu0 %1127
        %1129 = vrot.lane.b32.xlu0 %v1122, 125
        %v1130 = vpop.permute.xlu0 %1129
        %1131 = vrot.lane.b32.xlu0 %v1123, 125
        %v1132 = vpop.permute.xlu0 %1131
        %v1136 = vadd.f32 %v1118, %v1128
        %v1137 = vadd.f32 %v1119, %v1130
        %v1138 = vadd.f32 %v1120, %v1132
        %v1139 = vmul.f32 %v1079, 0.21300554
        %v1140 = vmul.f32 %v1080, 0.21300554
        %v1141 = vmul.f32 %v1081, 0.21300554
        %1145 = vrot.lane.b32.xlu0 %v1139, 124
        %v1146 = vpop.permute.xlu0 %1145
        %1147 = vrot.lane.b32.xlu0 %v1140, 124
        %v1148 = vpop.permute.xlu0 %1147
        %1149 = vrot.lane.b32.xlu0 %v1141, 124
        %v1150 = vpop.permute.xlu0 %1149
        %v1154 = vadd.f32 %v1136, %v1146
        %v1155 = vadd.f32 %v1137, %v1148
        %v1156 = vadd.f32 %v1138, %v1150
        %v1157 = vmul.f32 %v1079, 0.26601171
        %v1158 = vmul.f32 %v1080, 0.26601171
        %v1159 = vmul.f32 %v1081, 0.26601171
        %1163 = vrot.lane.b32.xlu0 %v1157, 123
        %v1164 = vpop.permute.xlu0 %1163
        %1165 = vrot.lane.b32.xlu0 %v1158, 123
        %v1166 = vpop.permute.xlu0 %1165
        %1167 = vrot.lane.b32.xlu0 %v1159, 123
        %v1168 = vpop.permute.xlu0 %1167
        %v1172 = vadd.f32 %v1154, %v1164
        %v1173 = vadd.f32 %v1155, %v1166
        %v1174 = vadd.f32 %v1156, %v1168
        %1175 = vrot.lane.b32.xlu0 %v1139, 122
        %v1176 = vpop.permute.xlu0 %1175
        %1177 = vrot.lane.b32.xlu0 %v1140, 122
        %v1178 = vpop.permute.xlu0 %1177
        %1179 = vrot.lane.b32.xlu0 %v1141, 122
        %v1180 = vpop.permute.xlu0 %1179
        %v1184 = vadd.f32 %v1172, %v1176
        %v1185 = vadd.f32 %v1173, %v1178
        %v1186 = vadd.f32 %v1174, %v1180
        %1187 = vrot.lane.b32.xlu0 %v1121, 121
        %v1188 = vpop.permute.xlu0 %1187
        %1189 = vrot.lane.b32.xlu0 %v1122, 121
        %v1190 = vpop.permute.xlu0 %1189
        %1191 = vrot.lane.b32.xlu0 %v1123, 121
        %v1192 = vpop.permute.xlu0 %1191
        %v1196 = vadd.f32 %v1184, %v1188
        %v1197 = vadd.f32 %v1185, %v1190
        %v1198 = vadd.f32 %v1186, %v1192
        %1199 = vrot.lane.b32.xlu0 %v1103, 120
        %v1200 = vpop.permute.xlu0 %1199
        %1201 = vrot.lane.b32.xlu0 %v1104, 120
        %v1202 = vpop.permute.xlu0 %1201
        %1203 = vrot.lane.b32.xlu0 %v1105, 120
        %v1204 = vpop.permute.xlu0 %1203
        %v1208 = vadd.f32 %v1196, %v1200
        %v1209 = vadd.f32 %v1197, %v1202
        %v1210 = vadd.f32 %v1198, %v1204
        %1211 = vrot.lane.b32.xlu0 %v1085, 119
        %v1212 = vpop.permute.xlu0 %1211
        %1213 = vrot.lane.b32.xlu0 %v1086, 119
        %v1214 = vpop.permute.xlu0 %1213
        %1215 = vrot.lane.b32.xlu0 %v1087, 119
        %v1216 = vpop.permute.xlu0 %1215
        %v1220 = vadd.f32 %v1208, %v1212
        %v1221 = vadd.f32 %v1209, %v1214
        %v1222 = vadd.f32 %v1210, %v1216
        %1226 = vrot.lane.b32.xlu0 %v1082, 118
        %v1227 = vpop.permute.xlu0 %1226
        %1228 = vrot.lane.b32.xlu0 %v1083, 118
        %v1229 = vpop.permute.xlu0 %1228
        %1230 = vrot.lane.b32.xlu0 %v1084, 118
        %v1231 = vpop.permute.xlu0 %1230
        %v1235 = vadd.f32 %v1220, %v1227
        %v1236 = vadd.f32 %v1221, %v1229
        %v1237 = vadd.f32 %v1222, %v1231
        %v1238 = vmul.f32 %v557, %v557
        %v1239 = vmul.f32 %v558, %v558
        %v1240 = vmul.f32 %v559, %v559
        %v1241 = vsub.f32 %v1235, %v1238
        %v1242 = vsub.f32 %v1236, %v1239
        %v1243 = vsub.f32 %v1237, %v1240
        %v1244 = vmul.f32 %v213, %v213
        %v1245 = vmul.f32 %v214, %v214
        %v1246 = vmul.f32 %v215, %v215
        %v1247 = vmul.f32 %v216, %v216
        %v1248 = vmul.f32 %v217, %v217
        %v1249 = vmul.f32 %v218, %v218
        %v1250 = vmul.f32 %v1244, 0.0010283801
        %v1251 = vmul.f32 %v1246, 0.0010283801
        %v1252 = vmul.f32 %v1248, 0.0010283801
        %v1253 = vmul.f32 %v1244, 0.007598758
        %v1254 = vmul.f32 %v1246, 0.007598758
        %v1255 = vmul.f32 %v1248, 0.007598758
        %v1259 = vrot.slane %v1253, 1
        %v1260 = vrot.slane %v1254, 1
        %v1261 = vrot.slane %v1255, 1
        %v1265 = vadd.f32 %v1250, %v1259
        %v1266 = vadd.f32 %v1251, %v1260
        %v1267 = vadd.f32 %v1252, %v1261
        %v1268 = vmul.f32 %v1244, 0.036000773
        %v1269 = vmul.f32 %v1246, 0.036000773
        %v1270 = vmul.f32 %v1248, 0.036000773
        %v1274 = vrot.slane %v1268, 2
        %v1275 = vrot.slane %v1269, 2
        %v1276 = vrot.slane %v1270, 2
        %v1280 = vadd.f32 %v1265, %v1274
        %v1281 = vadd.f32 %v1266, %v1275
        %v1282 = vadd.f32 %v1267, %v1276
        %v1283 = vmul.f32 %v1244, 0.10936069
        %v1284 = vmul.f32 %v1245, 0.10936069
        %v1285 = vmul.f32 %v1246, 0.10936069
        %v1286 = vmul.f32 %v1247, 0.10936069
        %v1287 = vmul.f32 %v1248, 0.10936069
        %v1288 = vmul.f32 %v1249, 0.10936069
        %v1295 = vrot.slane %v1283, 3
        %v1296 = vrot.slane %v1284, 3
        %v1297 = vsel %vm264, %v1295, %v1296
        %v1298 = vrot.slane %v1285, 3
        %v1299 = vrot.slane %v1286, 3
        %v1300 = vsel %vm264, %v1298, %v1299
        %v1301 = vrot.slane %v1287, 3
        %v1302 = vrot.slane %v1288, 3
        %v1303 = vsel %vm264, %v1301, %v1302
        %v1307 = vadd.f32 %v1280, %v1297
        %v1308 = vadd.f32 %v1281, %v1300
        %v1309 = vadd.f32 %v1282, %v1303
        %v1310 = vmul.f32 %v1244, 0.21300554
        %v1311 = vmul.f32 %v1245, 0.21300554
        %v1312 = vmul.f32 %v1246, 0.21300554
        %v1313 = vmul.f32 %v1247, 0.21300554
        %v1314 = vmul.f32 %v1248, 0.21300554
        %v1315 = vmul.f32 %v1249, 0.21300554
        %v1322 = vrot.slane %v1310, 4
        %v1323 = vrot.slane %v1311, 4
        %v1324 = vsel %vm292, %v1322, %v1323
        %v1325 = vrot.slane %v1312, 4
        %v1326 = vrot.slane %v1313, 4
        %v1327 = vsel %vm292, %v1325, %v1326
        %v1328 = vrot.slane %v1314, 4
        %v1329 = vrot.slane %v1315, 4
        %v1330 = vsel %vm292, %v1328, %v1329
        %v1334 = vadd.f32 %v1307, %v1324
        %v1335 = vadd.f32 %v1308, %v1327
        %v1336 = vadd.f32 %v1309, %v1330
        %v1337 = vmul.f32 %v1244, 0.26601171
        %v1338 = vmul.f32 %v1245, 0.26601171
        %v1339 = vmul.f32 %v1246, 0.26601171
        %v1340 = vmul.f32 %v1247, 0.26601171
        %v1341 = vmul.f32 %v1248, 0.26601171
        %v1342 = vmul.f32 %v1249, 0.26601171
        %v1349 = vrot.slane %v1337, 5
        %v1350 = vrot.slane %v1338, 5
        %v1351 = vsel %vm320, %v1349, %v1350
        %v1352 = vrot.slane %v1339, 5
        %v1353 = vrot.slane %v1340, 5
        %v1354 = vsel %vm320, %v1352, %v1353
        %v1355 = vrot.slane %v1341, 5
        %v1356 = vrot.slane %v1342, 5
        %v1357 = vsel %vm320, %v1355, %v1356
        %v1361 = vadd.f32 %v1334, %v1351
        %v1362 = vadd.f32 %v1335, %v1354
        %v1363 = vadd.f32 %v1336, %v1357
        %v1364 = vrot.slane %v1310, 6
        %v1365 = vrot.slane %v1311, 6
        %v1366 = vsel %vm336, %v1364, %v1365
        %v1367 = vrot.slane %v1312, 6
        %v1368 = vrot.slane %v1313, 6
        %v1369 = vsel %vm336, %v1367, %v1368
        %v1370 = vrot.slane %v1314, 6
        %v1371 = vrot.slane %v1315, 6
        %v1372 = vsel %vm336, %v1370, %v1371
        %v1376 = vadd.f32 %v1361, %v1366
        %v1377 = vadd.f32 %v1362, %v1369
        %v1378 = vadd.f32 %v1363, %v1372
        %v1379 = vrot.slane %v1283, 7
        %v1380 = vrot.slane %v1284, 7
        %v1381 = vsel %vm352, %v1379, %v1380
        %v1382 = vrot.slane %v1285, 7
        %v1383 = vrot.slane %v1286, 7
        %v1384 = vsel %vm352, %v1382, %v1383
        %v1385 = vrot.slane %v1287, 7
        %v1386 = vrot.slane %v1288, 7
        %v1387 = vsel %vm352, %v1385, %v1386
        %v1391 = vadd.f32 %v1376, %v1381
        %v1392 = vadd.f32 %v1377, %v1384
        %v1393 = vadd.f32 %v1378, %v1387
        %v1394 = vmul.f32 %v1245, 0.036000773
        %v1395 = vmul.f32 %v1247, 0.036000773
        %v1396 = vmul.f32 %v1249, 0.036000773
        %v1397 = vadd.f32 %v1391, %v1394
        %v1398 = vadd.f32 %v1392, %v1395
        %v1399 = vadd.f32 %v1393, %v1396
        %v1400 = vmul.f32 %v1245, 0.007598758
        %v1401 = vmul.f32 %v1247, 0.007598758
        %v1402 = vmul.f32 %v1249, 0.007598758
        %v1406 = vrot.slane %v1400, 1
        %v1407 = vrot.slane %v1401, 1
        %v1408 = vrot.slane %v1402, 1
        %v1412 = vadd.f32 %v1397, %v1406
        %v1413 = vadd.f32 %v1398, %v1407
        %v1414 = vadd.f32 %v1399, %v1408
        %v1415 = vmul.f32 %v1245, 0.0010283801
        %v1416 = vmul.f32 %v1247, 0.0010283801
        %v1417 = vmul.f32 %v1249, 0.0010283801
        %v1421 = vrot.slane %v1415, 2
        %v1422 = vrot.slane %v1416, 2
        %v1423 = vrot.slane %v1417, 2
        %v1427 = vadd.f32 %v1412, %v1421
        %v1428 = vadd.f32 %v1413, %v1422
        %v1429 = vadd.f32 %v1414, %v1423
        %v1430 = vmul.f32 %v1427, 0.0010283801
        %v1431 = vmul.f32 %v1428, 0.0010283801
        %v1432 = vmul.f32 %v1429, 0.0010283801
        %v1433 = vmul.f32 %v1427, 0.007598758
        %v1434 = vmul.f32 %v1428, 0.007598758
        %v1435 = vmul.f32 %v1429, 0.007598758
        %1439 = vrot.lane.b32.xlu0 %v1433, 127
        %v1440 = vpop.permute.xlu0 %1439
        %1441 = vrot.lane.b32.xlu0 %v1434, 127
        %v1442 = vpop.permute.xlu0 %1441
        %1443 = vrot.lane.b32.xlu0 %v1435, 127
        %v1444 = vpop.permute.xlu0 %1443
        %v1448 = vadd.f32 %v1430, %v1440
        %v1449 = vadd.f32 %v1431, %v1442
        %v1450 = vadd.f32 %v1432, %v1444
        %v1451 = vmul.f32 %v1427, 0.036000773
        %v1452 = vmul.f32 %v1428, 0.036000773
        %v1453 = vmul.f32 %v1429, 0.036000773
        %1457 = vrot.lane.b32.xlu0 %v1451, 126
        %v1458 = vpop.permute.xlu0 %1457
        %1459 = vrot.lane.b32.xlu0 %v1452, 126
        %v1460 = vpop.permute.xlu0 %1459
        %1461 = vrot.lane.b32.xlu0 %v1453, 126
        %v1462 = vpop.permute.xlu0 %1461
        %v1466 = vadd.f32 %v1448, %v1458
        %v1467 = vadd.f32 %v1449, %v1460
        %v1468 = vadd.f32 %v1450, %v1462
        %v1469 = vmul.f32 %v1427, 0.10936069
        %v1470 = vmul.f32 %v1428, 0.10936069
        %v1471 = vmul.f32 %v1429, 0.10936069
        %1475 = vrot.lane.b32.xlu0 %v1469, 125
        %v1476 = vpop.permute.xlu0 %1475
        %1477 = vrot.lane.b32.xlu0 %v1470, 125
        %v1478 = vpop.permute.xlu0 %1477
        %1479 = vrot.lane.b32.xlu0 %v1471, 125
        %v1480 = vpop.permute.xlu0 %1479
        %v1484 = vadd.f32 %v1466, %v1476
        %v1485 = vadd.f32 %v1467, %v1478
        %v1486 = vadd.f32 %v1468, %v1480
        %v1487 = vmul.f32 %v1427, 0.21300554
        %v1488 = vmul.f32 %v1428, 0.21300554
        %v1489 = vmul.f32 %v1429, 0.21300554
        %1493 = vrot.lane.b32.xlu0 %v1487, 124
        %v1494 = vpop.permute.xlu0 %1493
        %1495 = vrot.lane.b32.xlu0 %v1488, 124
        %v1496 = vpop.permute.xlu0 %1495
        %1497 = vrot.lane.b32.xlu0 %v1489, 124
        %v1498 = vpop.permute.xlu0 %1497
        %v1502 = vadd.f32 %v1484, %v1494
        %v1503 = vadd.f32 %v1485, %v1496
        %v1504 = vadd.f32 %v1486, %v1498
        %v1505 = vmul.f32 %v1427, 0.26601171
        %v1506 = vmul.f32 %v1428, 0.26601171
        %v1507 = vmul.f32 %v1429, 0.26601171
        %1511 = vrot.lane.b32.xlu0 %v1505, 123
        %v1512 = vpop.permute.xlu0 %1511
        %1513 = vrot.lane.b32.xlu0 %v1506, 123
        %v1514 = vpop.permute.xlu0 %1513
        %1515 = vrot.lane.b32.xlu0 %v1507, 123
        %v1516 = vpop.permute.xlu0 %1515
        %v1520 = vadd.f32 %v1502, %v1512
        %v1521 = vadd.f32 %v1503, %v1514
        %v1522 = vadd.f32 %v1504, %v1516
        %1523 = vrot.lane.b32.xlu0 %v1487, 122
        %v1524 = vpop.permute.xlu0 %1523
        %1525 = vrot.lane.b32.xlu0 %v1488, 122
        %v1526 = vpop.permute.xlu0 %1525
        %1527 = vrot.lane.b32.xlu0 %v1489, 122
        %v1528 = vpop.permute.xlu0 %1527
        %v1532 = vadd.f32 %v1520, %v1524
        %v1533 = vadd.f32 %v1521, %v1526
        %v1534 = vadd.f32 %v1522, %v1528
        %1535 = vrot.lane.b32.xlu0 %v1469, 121
        %v1536 = vpop.permute.xlu0 %1535
        %1537 = vrot.lane.b32.xlu0 %v1470, 121
        %v1538 = vpop.permute.xlu0 %1537
        %1539 = vrot.lane.b32.xlu0 %v1471, 121
        %v1540 = vpop.permute.xlu0 %1539
        %v1544 = vadd.f32 %v1532, %v1536
        %v1545 = vadd.f32 %v1533, %v1538
        %v1546 = vadd.f32 %v1534, %v1540
        %1547 = vrot.lane.b32.xlu0 %v1451, 120
        %v1548 = vpop.permute.xlu0 %1547
        %1549 = vrot.lane.b32.xlu0 %v1452, 120
        %v1550 = vpop.permute.xlu0 %1549
        %1551 = vrot.lane.b32.xlu0 %v1453, 120
        %v1552 = vpop.permute.xlu0 %1551
        %v1556 = vadd.f32 %v1544, %v1548
        %v1557 = vadd.f32 %v1545, %v1550
        %v1558 = vadd.f32 %v1546, %v1552
        %1559 = vrot.lane.b32.xlu0 %v1433, 119
        %v1560 = vpop.permute.xlu0 %1559
        %1561 = vrot.lane.b32.xlu0 %v1434, 119
        %v1562 = vpop.permute.xlu0 %1561
        %1563 = vrot.lane.b32.xlu0 %v1435, 119
        %v1564 = vpop.permute.xlu0 %1563
        %v1568 = vadd.f32 %v1556, %v1560
        %v1569 = vadd.f32 %v1557, %v1562
        %v1570 = vadd.f32 %v1558, %v1564
        %1574 = vrot.lane.b32.xlu0 %v1430, 118
        %v1575 = vpop.permute.xlu0 %1574
        %1576 = vrot.lane.b32.xlu0 %v1431, 118
        %v1577 = vpop.permute.xlu0 %1576
        %1578 = vrot.lane.b32.xlu0 %v1432, 118
        %v1579 = vpop.permute.xlu0 %1578
        %v1583 = vadd.f32 %v1568, %v1575
        %v1584 = vadd.f32 %v1569, %v1577
        %v1585 = vadd.f32 %v1570, %v1579
        %v1586 = vmul.f32 %v893, %v893
        %v1587 = vmul.f32 %v894, %v894
        %v1588 = vmul.f32 %v895, %v895
        %v1589 = vsub.f32 %v1583, %v1586
        %v1590 = vsub.f32 %v1584, %v1587
        %v1591 = vsub.f32 %v1585, %v1588
        %v1592 = vmul.f32 %v207, %v213
        %v1593 = vmul.f32 %v208, %v214
        %v1594 = vmul.f32 %v209, %v215
        %v1595 = vmul.f32 %v210, %v216
        %v1596 = vmul.f32 %v211, %v217
        %v1597 = vmul.f32 %v212, %v218
        %v1598 = vmul.f32 %v1592, 0.0010283801
        %v1599 = vmul.f32 %v1594, 0.0010283801
        %v1600 = vmul.f32 %v1596, 0.0010283801
        %v1601 = vmul.f32 %v1592, 0.007598758
        %v1602 = vmul.f32 %v1594, 0.007598758
        %v1603 = vmul.f32 %v1596, 0.007598758
        %v1607 = vrot.slane %v1601, 1
        %v1608 = vrot.slane %v1602, 1
        %v1609 = vrot.slane %v1603, 1
        %v1613 = vadd.f32 %v1598, %v1607
        %v1614 = vadd.f32 %v1599, %v1608
        %v1615 = vadd.f32 %v1600, %v1609
        %v1616 = vmul.f32 %v1592, 0.036000773
        %v1617 = vmul.f32 %v1594, 0.036000773
        %v1618 = vmul.f32 %v1596, 0.036000773
        %v1622 = vrot.slane %v1616, 2
        %v1623 = vrot.slane %v1617, 2
        %v1624 = vrot.slane %v1618, 2
        %v1628 = vadd.f32 %v1613, %v1622
        %v1629 = vadd.f32 %v1614, %v1623
        %v1630 = vadd.f32 %v1615, %v1624
        %v1631 = vmul.f32 %v1592, 0.10936069
        %v1632 = vmul.f32 %v1593, 0.10936069
        %v1633 = vmul.f32 %v1594, 0.10936069
        %v1634 = vmul.f32 %v1595, 0.10936069
        %v1635 = vmul.f32 %v1596, 0.10936069
        %v1636 = vmul.f32 %v1597, 0.10936069
        %v1643 = vrot.slane %v1631, 3
        %v1644 = vrot.slane %v1632, 3
        %v1645 = vsel %vm264, %v1643, %v1644
        %v1646 = vrot.slane %v1633, 3
        %v1647 = vrot.slane %v1634, 3
        %v1648 = vsel %vm264, %v1646, %v1647
        %v1649 = vrot.slane %v1635, 3
        %v1650 = vrot.slane %v1636, 3
        %v1651 = vsel %vm264, %v1649, %v1650
        %v1655 = vadd.f32 %v1628, %v1645
        %v1656 = vadd.f32 %v1629, %v1648
        %v1657 = vadd.f32 %v1630, %v1651
        %v1658 = vmul.f32 %v1592, 0.21300554
        %v1659 = vmul.f32 %v1593, 0.21300554
        %v1660 = vmul.f32 %v1594, 0.21300554
        %v1661 = vmul.f32 %v1595, 0.21300554
        %v1662 = vmul.f32 %v1596, 0.21300554
        %v1663 = vmul.f32 %v1597, 0.21300554
        %v1670 = vrot.slane %v1658, 4
        %v1671 = vrot.slane %v1659, 4
        %v1672 = vsel %vm292, %v1670, %v1671
        %v1673 = vrot.slane %v1660, 4
        %v1674 = vrot.slane %v1661, 4
        %v1675 = vsel %vm292, %v1673, %v1674
        %v1676 = vrot.slane %v1662, 4
        %v1677 = vrot.slane %v1663, 4
        %v1678 = vsel %vm292, %v1676, %v1677
        %v1682 = vadd.f32 %v1655, %v1672
        %v1683 = vadd.f32 %v1656, %v1675
        %v1684 = vadd.f32 %v1657, %v1678
        %v1685 = vmul.f32 %v1592, 0.26601171
        %v1686 = vmul.f32 %v1593, 0.26601171
        %v1687 = vmul.f32 %v1594, 0.26601171
        %v1688 = vmul.f32 %v1595, 0.26601171
        %v1689 = vmul.f32 %v1596, 0.26601171
        %v1690 = vmul.f32 %v1597, 0.26601171
        %v1697 = vrot.slane %v1685, 5
        %v1698 = vrot.slane %v1686, 5
        %v1699 = vsel %vm320, %v1697, %v1698
        %v1700 = vrot.slane %v1687, 5
        %v1701 = vrot.slane %v1688, 5
        %v1702 = vsel %vm320, %v1700, %v1701
        %v1703 = vrot.slane %v1689, 5
        %v1704 = vrot.slane %v1690, 5
        %v1705 = vsel %vm320, %v1703, %v1704
        %v1709 = vadd.f32 %v1682, %v1699
        %v1710 = vadd.f32 %v1683, %v1702
        %v1711 = vadd.f32 %v1684, %v1705
        %v1712 = vrot.slane %v1658, 6
        %v1713 = vrot.slane %v1659, 6
        %v1714 = vsel %vm336, %v1712, %v1713
        %v1715 = vrot.slane %v1660, 6
        %v1716 = vrot.slane %v1661, 6
        %v1717 = vsel %vm336, %v1715, %v1716
        %v1718 = vrot.slane %v1662, 6
        %v1719 = vrot.slane %v1663, 6
        %v1720 = vsel %vm336, %v1718, %v1719
        %v1724 = vadd.f32 %v1709, %v1714
        %v1725 = vadd.f32 %v1710, %v1717
        %v1726 = vadd.f32 %v1711, %v1720
        %v1727 = vrot.slane %v1631, 7
        %v1728 = vrot.slane %v1632, 7
        %v1729 = vsel %vm352, %v1727, %v1728
        %v1730 = vrot.slane %v1633, 7
        %v1731 = vrot.slane %v1634, 7
        %v1732 = vsel %vm352, %v1730, %v1731
        %v1733 = vrot.slane %v1635, 7
        %v1734 = vrot.slane %v1636, 7
        %v1735 = vsel %vm352, %v1733, %v1734
        %v1739 = vadd.f32 %v1724, %v1729
        %v1740 = vadd.f32 %v1725, %v1732
        %v1741 = vadd.f32 %v1726, %v1735
        %v1742 = vmul.f32 %v1593, 0.036000773
        %v1743 = vmul.f32 %v1595, 0.036000773
        %v1744 = vmul.f32 %v1597, 0.036000773
        %v1745 = vadd.f32 %v1739, %v1742
        %v1746 = vadd.f32 %v1740, %v1743
        %v1747 = vadd.f32 %v1741, %v1744
        %v1748 = vmul.f32 %v1593, 0.007598758
        %v1749 = vmul.f32 %v1595, 0.007598758
        %v1750 = vmul.f32 %v1597, 0.007598758
        %v1754 = vrot.slane %v1748, 1
        %v1755 = vrot.slane %v1749, 1
        %v1756 = vrot.slane %v1750, 1
        %v1760 = vadd.f32 %v1745, %v1754
        %v1761 = vadd.f32 %v1746, %v1755
        %v1762 = vadd.f32 %v1747, %v1756
        %v1763 = vmul.f32 %v1593, 0.0010283801
        %v1764 = vmul.f32 %v1595, 0.0010283801
        %v1765 = vmul.f32 %v1597, 0.0010283801
        %v1769 = vrot.slane %v1763, 2
        %v1770 = vrot.slane %v1764, 2
        %v1771 = vrot.slane %v1765, 2
        %v1775 = vadd.f32 %v1760, %v1769
        %v1776 = vadd.f32 %v1761, %v1770
        %v1777 = vadd.f32 %v1762, %v1771
        %v1778 = vmul.f32 %v1775, 0.0010283801
        %v1779 = vmul.f32 %v1776, 0.0010283801
        %v1780 = vmul.f32 %v1777, 0.0010283801
        %v1781 = vmul.f32 %v1775, 0.007598758
        %v1782 = vmul.f32 %v1776, 0.007598758
        %v1783 = vmul.f32 %v1777, 0.007598758
        %1787 = vrot.lane.b32.xlu0 %v1781, 127
        %v1788 = vpop.permute.xlu0 %1787
        %1789 = vrot.lane.b32.xlu0 %v1782, 127
        %v1790 = vpop.permute.xlu0 %1789
        %1791 = vrot.lane.b32.xlu0 %v1783, 127
        %v1792 = vpop.permute.xlu0 %1791
        %v1796 = vadd.f32 %v1778, %v1788
        %v1797 = vadd.f32 %v1779, %v1790
        %v1798 = vadd.f32 %v1780, %v1792
        %v1799 = vmul.f32 %v1775, 0.036000773
        %v1800 = vmul.f32 %v1776, 0.036000773
        %v1801 = vmul.f32 %v1777, 0.036000773
        %1805 = vrot.lane.b32.xlu0 %v1799, 126
        %v1806 = vpop.permute.xlu0 %1805
        %1807 = vrot.lane.b32.xlu0 %v1800, 126
        %v1808 = vpop.permute.xlu0 %1807
        %1809 = vrot.lane.b32.xlu0 %v1801, 126
        %v1810 = vpop.permute.xlu0 %1809
        %v1814 = vadd.f32 %v1796, %v1806
        %v1815 = vadd.f32 %v1797, %v1808
        %v1816 = vadd.f32 %v1798, %v1810
        %v1817 = vmul.f32 %v1775, 0.10936069
        %v1818 = vmul.f32 %v1776, 0.10936069
        %v1819 = vmul.f32 %v1777, 0.10936069
        %1823 = vrot.lane.b32.xlu0 %v1817, 125
        %v1824 = vpop.permute.xlu0 %1823
        %1825 = vrot.lane.b32.xlu0 %v1818, 125
        %v1826 = vpop.permute.xlu0 %1825
        %1827 = vrot.lane.b32.xlu0 %v1819, 125
        %v1828 = vpop.permute.xlu0 %1827
        %v1832 = vadd.f32 %v1814, %v1824
        %v1833 = vadd.f32 %v1815, %v1826
        %v1834 = vadd.f32 %v1816, %v1828
        %v1835 = vmul.f32 %v1775, 0.21300554
        %v1836 = vmul.f32 %v1776, 0.21300554
        %v1837 = vmul.f32 %v1777, 0.21300554
        %1841 = vrot.lane.b32.xlu0 %v1835, 124
        %v1842 = vpop.permute.xlu0 %1841
        %1843 = vrot.lane.b32.xlu0 %v1836, 124
        %v1844 = vpop.permute.xlu0 %1843
        %1845 = vrot.lane.b32.xlu0 %v1837, 124
        %v1846 = vpop.permute.xlu0 %1845
        %v1850 = vadd.f32 %v1832, %v1842
        %v1851 = vadd.f32 %v1833, %v1844
        %v1852 = vadd.f32 %v1834, %v1846
        %v1853 = vmul.f32 %v1775, 0.26601171
        %v1854 = vmul.f32 %v1776, 0.26601171
        %v1855 = vmul.f32 %v1777, 0.26601171
        %1859 = vrot.lane.b32.xlu0 %v1853, 123
        %v1860 = vpop.permute.xlu0 %1859
        %1861 = vrot.lane.b32.xlu0 %v1854, 123
        %v1862 = vpop.permute.xlu0 %1861
        %1863 = vrot.lane.b32.xlu0 %v1855, 123
        %v1864 = vpop.permute.xlu0 %1863
        %v1868 = vadd.f32 %v1850, %v1860
        %v1869 = vadd.f32 %v1851, %v1862
        %v1870 = vadd.f32 %v1852, %v1864
        %1871 = vrot.lane.b32.xlu0 %v1835, 122
        %v1872 = vpop.permute.xlu0 %1871
        %1873 = vrot.lane.b32.xlu0 %v1836, 122
        %v1874 = vpop.permute.xlu0 %1873
        %1875 = vrot.lane.b32.xlu0 %v1837, 122
        %v1876 = vpop.permute.xlu0 %1875
        %v1880 = vadd.f32 %v1868, %v1872
        %v1881 = vadd.f32 %v1869, %v1874
        %v1882 = vadd.f32 %v1870, %v1876
        %1883 = vrot.lane.b32.xlu0 %v1817, 121
        %v1884 = vpop.permute.xlu0 %1883
        %1885 = vrot.lane.b32.xlu0 %v1818, 121
        %v1886 = vpop.permute.xlu0 %1885
        %1887 = vrot.lane.b32.xlu0 %v1819, 121
        %v1888 = vpop.permute.xlu0 %1887
        %v1892 = vadd.f32 %v1880, %v1884
        %v1893 = vadd.f32 %v1881, %v1886
        %v1894 = vadd.f32 %v1882, %v1888
        %1895 = vrot.lane.b32.xlu0 %v1799, 120
        %v1896 = vpop.permute.xlu0 %1895
        %1897 = vrot.lane.b32.xlu0 %v1800, 120
        %v1898 = vpop.permute.xlu0 %1897
        %1899 = vrot.lane.b32.xlu0 %v1801, 120
        %v1900 = vpop.permute.xlu0 %1899
        %v1904 = vadd.f32 %v1892, %v1896
        %v1905 = vadd.f32 %v1893, %v1898
        %v1906 = vadd.f32 %v1894, %v1900
        %1907 = vrot.lane.b32.xlu0 %v1781, 119
        %v1908 = vpop.permute.xlu0 %1907
        %1909 = vrot.lane.b32.xlu0 %v1782, 119
        %v1910 = vpop.permute.xlu0 %1909
        %1911 = vrot.lane.b32.xlu0 %v1783, 119
        %v1912 = vpop.permute.xlu0 %1911
        %v1916 = vadd.f32 %v1904, %v1908
        %v1917 = vadd.f32 %v1905, %v1910
        %v1918 = vadd.f32 %v1906, %v1912
        %1922 = vrot.lane.b32.xlu0 %v1778, 118
        %v1923 = vpop.permute.xlu0 %1922
        %1924 = vrot.lane.b32.xlu0 %v1779, 118
        %v1925 = vpop.permute.xlu0 %1924
        %1926 = vrot.lane.b32.xlu0 %v1780, 118
        %v1927 = vpop.permute.xlu0 %1926
        %v1931 = vadd.f32 %v1916, %v1923
        %v1932 = vadd.f32 %v1917, %v1925
        %v1933 = vadd.f32 %v1918, %v1927
        %v1934 = vmul.f32 %v557, %v893
        %v1935 = vmul.f32 %v558, %v894
        %v1936 = vmul.f32 %v559, %v895
        %v1937 = vsub.f32 %v1931, %v1934
        %v1938 = vsub.f32 %v1932, %v1935
        %v1939 = vsub.f32 %v1933, %v1936
        %v1940 = vmul.f32 %v1937, 2.0
        %v1941 = vmul.f32 %v1938, 2.0
        %v1942 = vmul.f32 %v1939, 2.0
        %v1943 = vadd.f32 %v1940, 58.5225
        %v1944 = vadd.f32 %v1941, 58.5225
        %v1945 = vadd.f32 %v1942, 58.5225
        %v1946 = vadd.f32 %v1241, %v1589
        %v1947 = vadd.f32 %v1242, %v1590
        %v1948 = vadd.f32 %v1243, %v1591
        %v1949 = vadd.f32 %v1946, 58.5225
        %v1950 = vadd.f32 %v1947, 58.5225
        %v1951 = vadd.f32 %v1948, 58.5225
        %v1952 = vrcp.pop %v1949
        %v1953 = vmul.f32 %v1943, %v1952
        %v1954 = vrcp.pop %v1950
        %v1955 = vmul.f32 %v1944, %v1954
        %v1956 = vrcp.pop %v1951
        %v1957 = vmul.f32 %v1945, %v1956
        %v1958 = vmul.f32 %v557, 2.0
        %v1959 = vmul.f32 %v558, 2.0
        %v1960 = vmul.f32 %v559, 2.0
        %v1961 = vmul.f32 %v1958, %v893
        %v1962 = vmul.f32 %v1959, %v894
        %v1963 = vmul.f32 %v1960, %v895
        %v1964 = vadd.f32 %v1961, 6.5025
        %v1965 = vadd.f32 %v1962, 6.5025
        %v1966 = vadd.f32 %v1963, 6.5025
        %v1967 = vadd.f32 %v1238, %v1586
        %v1968 = vadd.f32 %v1239, %v1587
        %v1969 = vadd.f32 %v1240, %v1588
        %v1970 = vadd.f32 %v1967, 6.5025
        %v1971 = vadd.f32 %v1968, 6.5025
        %v1972 = vadd.f32 %v1969, 6.5025
        %v1973 = vrcp.pop %v1970
        %v1974 = vmul.f32 %v1964, %v1973
        %v1975 = vrcp.pop %v1971
        %v1976 = vmul.f32 %v1965, %v1975
        %v1977 = vrcp.pop %v1972
        %v1978 = vmul.f32 %v1966, %v1977
        %v1979 = vmul.f32 %v1974, %v1953
        %v1980 = vmul.f32 %v1976, %v1955
        %v1981 = vmul.f32 %v1978, %v1957
        %vm1982 = vcmask 46080
        %v1983 = vsel %vm1982, %v1979, 0.0
        %1984 = vadd.xlane.f32.xlu0 %v1983
        %v1985 = vpop.xlane.xlu0 %1984
        %v1986 = vsel %vm1982, %v1980, 0.0
        %1987 = vadd.xlane.f32.xlu0 %v1986
        %v1988 = vpop.xlane.xlu0 %1987
        %v1989 = vsel %vm1982, %v1981, 0.0
        %1990 = vadd.xlane.f32.xlu0 %v1989
        %v1991 = vpop.xlane.xlu0 %1990
        %vm1992 = vcmask 1045504
        %v1993 = vsel %vm1992, %v1985, 0.0
        %v1994 = vrot.slane %v1993, 4
        %v1995 = vadd.f32 %v1993, %v1994
        %v1996 = vrot.slane %v1995, 2
        %v1997 = vadd.f32 %v1995, %v1996
        %v1998 = vrot.slane %v1997, 1
        %v1999 = vadd.f32 %v1997, %v1998
        %v2000 = vsel %vm1992, %v1988, 0.0
        %v2001 = vrot.slane %v2000, 4
        %v2002 = vadd.f32 %v2000, %v2001
        %v2003 = vrot.slane %v2002, 2
        %v2004 = vadd.f32 %v2002, %v2003
        %v2005 = vrot.slane %v2004, 1
        %v2006 = vadd.f32 %v2004, %v2005
        %v2007 = vsel %vm1992, %v1991, 0.0
        %v2008 = vrot.slane %v2007, 4
        %v2009 = vadd.f32 %v2007, %v2008
        %v2010 = vrot.slane %v2009, 2
        %v2011 = vadd.f32 %v2009, %v2010
        %v2012 = vrot.slane %v2011, 1
        %v2013 = vadd.f32 %v2011, %v2012
        %v2014 = vmul.f32 %v1999, 0.027777778
        %v2015 = vmul.f32 %v2006, 0.027777778
        %v2016 = vmul.f32 %v2013, 0.027777778
        %vm2017 = vcmask 0
        %2018 = vst.msk [vmem:[%s205] sm:$0x1] %vm2017, %v2014
        %2019 = vst.msk [vmem:[%s205 + $0x1] sm:$0x1] %vm2017, %v2015
        %2020 = vst.msk [vmem:[%s205 + $0x2] sm:$0x1] %vm2017, %v2016
        %s2021 = smul.u32 3, %s19
        %p2022 = scmp.lt.s32.totalorder %s2021, 11
        %s2023 = scalar_select %p2022, %s2021, 11
        %s2024 = scalar_lea.vmem %s2, %s2023
        // Predicated region
        $region37: #{ssim_pallas.1} parent=27 // pred_check
          %p2025 = pneg %p89
        $region38: #{ssim_pallas.1} parent=27 // pred_check_branch
          %2027 = sbr.rel (%p2025) target = $region40
        $region39: #{ssim_pallas.1} parent=27 // pred_region
          %s2028 = smul.u32 3, %s19
        $region40: #{ssim_pallas.1} parent=27 // pred_fallthru
          _
      $region28: #{ssim_pallas.1} parent=5 // pred_fallthru
        _
      %p2029 = scmp.le.s32.totalorder 2, %s14
      // Predicated region
      $region41: #{ssim_pallas.1} parent=5 // pred_check
        %p2030 = pneg %p2029
      $region42: #{ssim_pallas.1} parent=5 // pred_check_branch
        %2032 = sbr.rel (%p2030) target = $region44
      $region43: #{ssim_pallas.1} parent=5 // pred_region
        %s2033 = ssub.s32 %s14, 2
        // Predicated region
        $region45: #{ssim_pallas.1} parent=43 // pred_check
          %p2034 = pneg %p95
        $region46: #{ssim_pallas.1} parent=43 // pred_check_branch
          %2036 = sbr.rel (%p2034) target = $region48
        $region47: #{ssim_pallas.1} parent=43 // pred_region
          %s2037 = smul.u32 3, %s20
          %p2038 = scmp.lt.s32.totalorder %s2037, 11
          %s2039 = scalar_select %p2038, %s2037, 11
          %s2040 = scalar_lea.vmem %s2, %s2039
        $region48: #{ssim_pallas.1} parent=43 // pred_fallthru
          _
      $region44: #{ssim_pallas.1} parent=5 // pred_fallthru
        _
    $region6: #{ssim_pallas.1} parent=1 // loop_footer
      %s18 = sadd.s32 1, %s14
    $region7: #{ssim_pallas.1} parent=1 // loop_footer_branch
      %13 = sbr.rel target = $region3
    $region8: #{ssim_pallas.1} parent=1 // loop_exit
      _
    %2041 = vsyncpa [#allocation3], 1
    %s2042 = scalar_lea.sflag [#allocation3], 1
    %2043 = vsyncpa %s2042, 1
    %2044 = vsyncpa [#allocation5], 1
    %s2045 = scalar_lea.sflag [#allocation5], 1
    %2046 = vsyncpa %s2045, 1

</llo_original>
